<compile_context>
chip_gen: v6e
topology: v6e:2x2x1
jax: 0.10.0
libtpu: 0.0.40
codegen_flags: <defaults>
</compile_context>

<pallas_src>
import functools

import jax
import jax.numpy as jnp
from jax.experimental import pallas as pl
from jax.experimental.pallas import tpu as pltpu

NEG_SLOPE = 0.01                 # F.leaky_relu default negative_slope
_OUT_DIMS = (256, 128, 64, 1)    # layer output widths


def _cdiv(a, b):
    return (a + b - 1) // b


def _round_up(a, b):
    return _cdiv(a, b) * b


def _leaky_relu(x):
    # For 0 <= a < 1, max(x, a*x) == leaky_relu(x): 2 VALU ops per element.
    return jnp.maximum(x, NEG_SLOPE * x)


def mlp_kernel(x_ref,
               w1_ref, b1_ref,
               w2_ref, b2_ref,
               w3_ref, b3_ref,
               w4_ref, b4_ref,
               o_ref, *, compute_dtype):
    """One batch tile: 4 fused matmuls + activations + sigmoid.

    x_ref : [tile_n, in_feats] f32  (cast to bf16 in-kernel for the MXU)
    w*    : bf16 weights stored [in, out]
    b*    : f32 biases [1, out]
    o_ref : [tile_n, 1] f32 sigmoid outputs
    """
    cd = compute_dtype  # MXU input dtype; accumulation stays f32.

    h = jnp.dot(x_ref[...].astype(cd), w1_ref[...],
                preferred_element_type=jnp.float32)
    h = _leaky_relu(h + b1_ref[...])

    h = jnp.dot(h.astype(cd), w2_ref[...], preferred_element_type=jnp.float32)
    h = _leaky_relu(h + b2_ref[...])

    h = jnp.dot(h.astype(cd), w3_ref[...], preferred_element_type=jnp.float32)
    h = _leaky_relu(h + b3_ref[...])

    # Final layer: [tile_n, 64] @ [64, 1] -> [tile_n, 1]; no transposes anywhere.
    y = jnp.dot(h.astype(cd), w4_ref[...], preferred_element_type=jnp.float32)
    y = y + b4_ref[...]

    # sigmoid: exp on the EUP; approximate reciprocal also lands on the EUP slot.
    o_ref[...] = pl.reciprocal(1.0 + jnp.exp(-y), approx=True).astype(o_ref.dtype)


def prepare_params(params, compute_dtype=jnp.bfloat16):
    """One-time weight prep, hoisted out of the per-call path.

    Weights -> bf16 MXU inputs (stored [in, out]); biases stay f32 [1, out].
    No zero-padding: full-array blocks are legal even when dims aren't
    multiples of (8, 128), and the MXU pads the contraction dim for free.
    """
    cd = compute_dtype
    prepped = {}
    for i, out_f in enumerate(_OUT_DIMS, start=1):
        prepped[f"w{i}"] = params[f"w{i}"].astype(cd)
        prepped[f"b{i}"] = params[f"b{i}"].reshape(1, out_f).astype(jnp.float32)
    return prepped


def _choose_tile_n(n_rows, in_feats, tile_cap=4096):
    """Big batch tiles, but (a) >= 4 grid steps when N allows so the parallel
    grid axis can split across both v7x TensorCores and (b) the f32 x
    double-buffer + intermediates stay well under v7x's 64 MiB VMEM."""
    # (b) VMEM-driven cap: target ~24 MiB for data buffers.
    per_row = 2 * in_feats * 4 + sum(_OUT_DIMS) * (4 + 2) + 8
    vmem_rows = max(8, (24 << 20) // per_row)
    cap = min(tile_cap, max(128, (vmem_rows // 128) * 128))
    # (a) aim for >= 4 grid steps.
    tile_n = min(cap, _round_up(max(_cdiv(n_rows, 4), 8), 128))
    # Never make the tile (much) larger than the array itself.
    return max(8, min(tile_n, _round_up(n_rows, 8)))


def _derive_vmem_limit(tile_n, in_feats):
    """vmem_limit_bytes from actual buffer sizes (2x headroom), not a flat 48 MiB."""
    x_buf = 2 * tile_n * in_feats * 4                                  # f32 x tile, double-buffered
    w_buf = 2 * 2 * (in_feats * 256 + 256 * 128 + 128 * 64 + 64)       # bf16 weights (2 buffers)
    b_buf = 2 * 4 * sum(_OUT_DIMS)                                     # f32 biases
    o_buf = 2 * tile_n * 4                                             # f32 output tile
    h_buf = tile_n * sum(_OUT_DIMS) * (4 + 2)                          # f32 h + bf16 casts
    est = x_buf + w_buf + b_buf + o_buf + h_buf
    return int(min(max(2 * est, 16 << 20), 64 << 20))


def mlp_forward(x, prepped, *, tile_cap=4096, compute_dtype=jnp.bfloat16):
    """x: [N, in_feats] f32.  prepped: output of prepare_params.  Returns [N, 1] f32."""
    n_rows, in_feats = x.shape
    tile_n = _choose_tile_n(n_rows, in_feats, tile_cap)
    num_tiles = _cdiv(n_rows, tile_n)   # partial last tile handled by OOB masking

    full = lambda shape: pl.BlockSpec(shape, lambda i: (0, 0))
    # Weights are grid-invariant (constant index_map -> stay resident in VMEM);
    # they are <100 KiB total so default double-buffering is free.
    w_specs = []
    for i in range(1, 5):
        w_specs.append(full(prepped[f"w{i}"].shape))
        w_specs.append(full(prepped[f"b{i}"].shape))

    flops = (2 * n_rows * (in_feats * 256 + 256 * 128 + 128 * 64 + 64)
             + 4 * n_rows * sum(_OUT_DIMS))
    bytes_accessed = (x.size * x.dtype.itemsize + n_rows * 4
                      + 2 * (in_feats * 256 + 256 * 128 + 128 * 64 + 64))

    out = pl.pallas_call(
        functools.partial(mlp_kernel, compute_dtype=compute_dtype),
        out_shape=jax.ShapeDtypeStruct((n_rows, 1), jnp.float32),
        grid_spec=pltpu.PrefetchScalarGridSpec(
            num_scalar_prefetch=0,
            grid=(num_tiles,),
            in_specs=[pl.BlockSpec((tile_n, in_feats), lambda i: (i, 0))] + w_specs,
            out_specs=pl.BlockSpec((tile_n, 1), lambda i: (i, 0)),
        ),
        compiler_params=pltpu.CompilerParams(
            dimension_semantics=("parallel",),
            vmem_limit_bytes=_derive_vmem_limit(tile_n, in_feats),
        ),
        cost_estimate=pl.CostEstimate(
            flops=flops,
            transcendentals=n_rows,
            bytes_accessed=bytes_accessed,
        ),
    )(x,
      prepped["w1"], prepped["b1"],
      prepped["w2"], prepped["b2"],
      prepped["w3"], prepped["b3"],
      prepped["w4"], prepped["b4"])

    return out


def init_params(key, in_feats):
    """nn.Linear-style init; weights stored [in, out], biases [1, out]."""
    dims = [(in_feats, 256), (256, 128), (128, 64), (64, 1)]
    params = {}
    for idx, (fi, fo) in enumerate(dims, start=1):
        key, kw, kb = jax.random.split(key, 3)
        bound = 1.0 / jnp.sqrt(jnp.float32(fi))
        params[f"w{idx}"] = jax.random.uniform(kw, (fi, fo), jnp.float32, -bound, bound)
        params[f"b{idx}"] = jax.random.uniform(kb, (1, fo), jnp.float32, -bound, bound)
    return params


def mlp_reference(x, params):
    h = x
    for i in range(1, 4):
        h = h @ params[f"w{i}"] + params[f"b{i}"]
        h = jnp.where(h > 0, h, NEG_SLOPE * h)
    h = h @ params["w4"] + params["b4"]
    return jax.nn.sigmoid(h)


if __name__ == "__main__":
    key = jax.random.PRNGKey(0)
    k_x, k_p = jax.random.split(key)

    # Small demo: exercises a partial last batch tile (500 rows, 128-row tiles
    # -> 4 grid steps, last one masked) and a non-128 feature width (32) that
    # is fed to the MXU unpadded.
    N, in_feats = 500, 32
    x = jax.random.normal(k_x, (N, in_feats), jnp.float32)
    params = init_params(k_p, in_feats)

    prepped = prepare_params(params)            # one-time weight prep (hoisted)
    fwd = jax.jit(mlp_forward)
    out = jax.block_until_ready(fwd(x, prepped))

    ref = mlp_reference(x, params)
    assert out.shape == (N, 1), out.shape
    err = float(jnp.max(jnp.abs(out - ref)))
    # bf16 matmul inputs + EUP approx reciprocal vs f32 reference.
    assert err < 2e-2, err

    print("KERNEL_OK")
</pallas_src>

<mosaic_0001>
module attributes {stable_mosaic.version = 11 : i64} {
  func.func @mlp_kernel(%arg0: i32, %arg1: memref<128x32xf32, #tpu.memory_space<vmem>>, %arg2: memref<32x256xbf16, #tpu.memory_space<vmem>>, %arg3: memref<1x256xf32, #tpu.memory_space<vmem>>, %arg4: memref<256x128xbf16, #tpu.memory_space<vmem>>, %arg5: memref<1x128xf32, #tpu.memory_space<vmem>>, %arg6: memref<128x64xbf16, #tpu.memory_space<vmem>>, %arg7: memref<1x64xf32, #tpu.memory_space<vmem>>, %arg8: memref<64x1xbf16, #tpu.memory_space<vmem>>, %arg9: memref<1x1xf32, #tpu.memory_space<vmem>>, %arg10: memref<128x1xf32, #tpu.memory_space<vmem>>) attributes {dimension_semantics = [#tpu.dimension_semantics<parallel>], iteration_bounds = array<i64: 4>, scalar_prefetch = 0 : i64, scratch_operands = 0 : i64, tpu.core_type = #tpu.core_type<tc>, window_params = [{transform_indices = @transform_0, window_bounds = array<i64: 128, 32>}, {pipeline_mode = #tpu.pipeline_mode<synchronous>, transform_indices = @transform_1, window_bounds = array<i64: 32, 256>}, {pipeline_mode = #tpu.pipeline_mode<synchronous>, transform_indices = @transform_2, window_bounds = array<i64: 1, 256>}, {pipeline_mode = #tpu.pipeline_mode<synchronous>, transform_indices = @transform_3, window_bounds = array<i64: 256, 128>}, {pipeline_mode = #tpu.pipeline_mode<synchronous>, transform_indices = @transform_4, window_bounds = array<i64: 1, 128>}, {pipeline_mode = #tpu.pipeline_mode<synchronous>, transform_indices = @transform_5, window_bounds = array<i64: 128, 64>}, {pipeline_mode = #tpu.pipeline_mode<synchronous>, transform_indices = @transform_6, window_bounds = array<i64: 1, 64>}, {pipeline_mode = #tpu.pipeline_mode<synchronous>, transform_indices = @transform_7, window_bounds = array<i64: 64, 1>}, {pipeline_mode = #tpu.pipeline_mode<synchronous>, transform_indices = @transform_8, window_bounds = array<i64: 1, 1>}, {transform_indices = @transform_9, window_bounds = array<i64: 128, 1>}]} {
    %c0 = arith.constant 0 : index
    %c0_0 = arith.constant 0 : index
    %0 = vector.load %arg1[%c0, %c0_0] : memref<128x32xf32, #tpu.memory_space<vmem>>, vector<128x32xf32>
    %1 = arith.truncf %0 : vector<128x32xf32> to vector<128x32xbf16>
    %c0_1 = arith.constant 0 : index
    %c0_2 = arith.constant 0 : index
    %2 = vector.load %arg2[%c0_1, %c0_2] : memref<32x256xbf16, #tpu.memory_space<vmem>>, vector<32x256xbf16>
    %cst = arith.constant dense<0.000000e+00> : vector<128x256xf32>
    %3 = tpu.matmul %1, %2, %cst {dimension_numbers = #tpu.dot_dimension_numbers<[1], [0], [0], [1], [0, 0, 1, 1], [], []>} : vector<128x32xbf16>, vector<32x256xbf16>, vector<128x256xf32> -> vector<128x256xf32>
    %c0_3 = arith.constant 0 : index
    %c0_4 = arith.constant 0 : index
    %4 = vector.load %arg3[%c0_3, %c0_4] : memref<1x256xf32, #tpu.memory_space<vmem>>, vector<1x256xf32>
    %5 = vector.broadcast %4 : vector<1x256xf32> to vector<128x256xf32>
    %6 = arith.addf %3, %5 : vector<128x256xf32>
    %cst_5 = arith.constant 0.00999999977 : f32
    %7 = vector.broadcast %cst_5 : f32 to vector<128x256xf32>
    %8 = arith.mulf %7, %6 : vector<128x256xf32>
    %9 = arith.maximumf %6, %8 : vector<128x256xf32>
    %10 = arith.truncf %9 : vector<128x256xf32> to vector<128x256xbf16>
    %c0_6 = arith.constant 0 : index
    %c0_7 = arith.constant 0 : index
    %11 = vector.load %arg4[%c0_6, %c0_7] : memref<256x128xbf16, #tpu.memory_space<vmem>>, vector<256x128xbf16>
    %cst_8 = arith.constant dense<0.000000e+00> : vector<128x128xf32>
    %12 = tpu.matmul %10, %11, %cst_8 {dimension_numbers = #tpu.dot_dimension_numbers<[1], [0], [0], [1], [0, 0, 1, 1], [], []>} : vector<128x256xbf16>, vector<256x128xbf16>, vector<128x128xf32> -> vector<128x128xf32>
    %c0_9 = arith.constant 0 : index
    %c0_10 = arith.constant 0 : index
    %13 = vector.load %arg5[%c0_9, %c0_10] : memref<1x128xf32, #tpu.memory_space<vmem>>, vector<1x128xf32>
    %14 = vector.broadcast %13 : vector<1x128xf32> to vector<128x128xf32>
    %15 = arith.addf %12, %14 : vector<128x128xf32>
    %cst_11 = arith.constant 0.00999999977 : f32
    %16 = vector.broadcast %cst_11 : f32 to vector<128x128xf32>
    %17 = arith.mulf %16, %15 : vector<128x128xf32>
    %18 = arith.maximumf %15, %17 : vector<128x128xf32>
    %19 = arith.truncf %18 : vector<128x128xf32> to vector<128x128xbf16>
    %c0_12 = arith.constant 0 : index
    %c0_13 = arith.constant 0 : index
    %20 = vector.load %arg6[%c0_12, %c0_13] : memref<128x64xbf16, #tpu.memory_space<vmem>>, vector<128x64xbf16>
    %cst_14 = arith.constant dense<0.000000e+00> : vector<128x64xf32>
    %21 = tpu.matmul %19, %20, %cst_14 {dimension_numbers = #tpu.dot_dimension_numbers<[1], [0], [0], [1], [0, 0, 1, 1], [], []>} : vector<128x128xbf16>, vector<128x64xbf16>, vector<128x64xf32> -> vector<128x64xf32>
    %c0_15 = arith.constant 0 : index
    %c0_16 = arith.constant 0 : index
    %22 = vector.load %arg7[%c0_15, %c0_16] : memref<1x64xf32, #tpu.memory_space<vmem>>, vector<1x64xf32>
    %23 = vector.broadcast %22 : vector<1x64xf32> to vector<128x64xf32>
    %24 = arith.addf %21, %23 : vector<128x64xf32>
    %cst_17 = arith.constant 0.00999999977 : f32
    %25 = vector.broadcast %cst_17 : f32 to vector<128x64xf32>
    %26 = arith.mulf %25, %24 : vector<128x64xf32>
    %27 = arith.maximumf %24, %26 : vector<128x64xf32>
    %28 = arith.truncf %27 : vector<128x64xf32> to vector<128x64xbf16>
    %c0_18 = arith.constant 0 : index
    %c0_19 = arith.constant 0 : index
    %29 = vector.load %arg8[%c0_18, %c0_19] : memref<64x1xbf16, #tpu.memory_space<vmem>>, vector<64x1xbf16>
    %cst_20 = arith.constant dense<0.000000e+00> : vector<128x1xf32>
    %30 = tpu.matmul %28, %29, %cst_20 {dimension_numbers = #tpu.dot_dimension_numbers<[1], [0], [0], [1], [0, 0, 1, 1], [], []>} : vector<128x64xbf16>, vector<64x1xbf16>, vector<128x1xf32> -> vector<128x1xf32>
    %c0_21 = arith.constant 0 : index
    %c0_22 = arith.constant 0 : index
    %31 = vector.load %arg9[%c0_21, %c0_22] : memref<1x1xf32, #tpu.memory_space<vmem>>, vector<1x1xf32>
    %32 = vector.broadcast %31 : vector<1x1xf32> to vector<128x1xf32>
    %33 = arith.addf %30, %32 : vector<128x1xf32>
    %cst_23 = arith.constant 0.000000e+00 : f32
    %34 = vector.broadcast %cst_23 : f32 to vector<128x1xf32>
    %35 = arith.subf %34, %33 : vector<128x1xf32>
    %36 = math.exp %35 : vector<128x1xf32>
    %cst_24 = arith.constant 1.000000e+00 : f32
    %37 = vector.broadcast %cst_24 : f32 to vector<128x1xf32>
    %38 = arith.addf %37, %36 : vector<128x1xf32>
    %39 = tpu.reciprocal %38 {approx = true} : vector<128x1xf32> -> vector<128x1xf32>
    %c0_25 = arith.constant 0 : index
    %c0_26 = arith.constant 0 : index
    %40 = vector.load %arg10[%c0_25, %c0_26] : memref<128x1xf32, #tpu.memory_space<vmem>>, vector<128x1xf32>
    tpu.vector_store %arg10[%c0_25, %c0_26], %39 {strides = array<i32>} : memref<128x1xf32, #tpu.memory_space<vmem>>, vector<128x1xf32>,
    return
  }
  func.func @transform_0(%arg0: i32) -> (i32, i32) {
    %c0_i32 = arith.constant 0 : i32
    %c0_i32_0 = arith.constant 0 : i32
    return %arg0, %c0_i32 : i32, i32
  }
  func.func @transform_1(%arg0: i32) -> (i32, i32) {
    %c0_i32 = arith.constant 0 : i32
    %c0_i32_0 = arith.constant 0 : i32
    %c0_i32_1 = arith.constant 0 : i32
    return %c0_i32, %c0_i32_0 : i32, i32
  }
  func.func @transform_2(%arg0: i32) -> (i32, i32) {
    %c0_i32 = arith.constant 0 : i32
    %c0_i32_0 = arith.constant 0 : i32
    %c0_i32_1 = arith.constant 0 : i32
    return %c0_i32, %c0_i32_0 : i32, i32
  }
  func.func @transform_3(%arg0: i32) -> (i32, i32) {
    %c0_i32 = arith.constant 0 : i32
    %c0_i32_0 = arith.constant 0 : i32
    %c0_i32_1 = arith.constant 0 : i32
    return %c0_i32, %c0_i32_0 : i32, i32
  }
  func.func @transform_4(%arg0: i32) -> (i32, i32) {
    %c0_i32 = arith.constant 0 : i32
    %c0_i32_0 = arith.constant 0 : i32
    %c0_i32_1 = arith.constant 0 : i32
    return %c0_i32, %c0_i32_0 : i32, i32
  }
  func.func @transform_5(%arg0: i32) -> (i32, i32) {
    %c0_i32 = arith.constant 0 : i32
    %c0_i32_0 = arith.constant 0 : i32
    %c0_i32_1 = arith.constant 0 : i32
    return %c0_i32, %c0_i32_0 : i32, i32
  }
  func.func @transform_6(%arg0: i32) -> (i32, i32) {
    %c0_i32 = arith.constant 0 : i32
    %c0_i32_0 = arith.constant 0 : i32
    %c0_i32_1 = arith.constant 0 : i32
    return %c0_i32, %c0_i32_0 : i32, i32
  }
  func.func @transform_7(%arg0: i32) -> (i32, i32) {
    %c0_i32 = arith.constant 0 : i32
    %c0_i32_0 = arith.constant 0 : i32
    %c0_i32_1 = arith.constant 0 : i32
    return %c0_i32, %c0_i32_0 : i32, i32
  }
  func.func @transform_8(%arg0: i32) -> (i32, i32) {
    %c0_i32 = arith.constant 0 : i32
    %c0_i32_0 = arith.constant 0 : i32
    %c0_i32_1 = arith.constant 0 : i32
    return %c0_i32, %c0_i32_0 : i32, i32
  }
  func.func @transform_9(%arg0: i32) -> (i32, i32) {
    %c0_i32 = arith.constant 0 : i32
    %c0_i32_0 = arith.constant 0 : i32
    return %arg0, %c0_i32 : i32, i32
  }
}

</mosaic_0001>

<llo_original>
// kernel: mlp_forward.1
$region0: #{mlp_forward.1}
  #allocation0 [shape = 'u32[]', space=smem, size = 0x4, offset = 0x4, fixed_abs, tag = 'smem constant byte address 0x4 - core index']
  #allocation1 [shape = 'u32[144,128]{1,0:T(1,128)}', space=vmem, size = 0x12000, scoped, tag = 'internal scratch']
  #allocation2 [shape = 'f32[1,1]{1,0:T(1,128)S(1)}', space=vmem, size = 0x200, scoped, tag = 'scoped memory for mlp_forward.1']
  %s0 = inlined_call_operand.vmem [shape: f32[500,32], index: 0, kind: input, shape index: {}]
  %s1 = inlined_call_operand.vmem [shape: bf16[32,256], index: 1, kind: input, shape index: {}]
  %s2 = inlined_call_operand.vmem [shape: f32[1,256], index: 2, kind: input, shape index: {}]
  %s3 = inlined_call_operand.vmem [shape: bf16[256,128], index: 3, kind: input, shape index: {}]
  %s4 = inlined_call_operand.vmem [shape: f32[1,128], index: 4, kind: input, shape index: {}]
  %s5 = inlined_call_operand.vmem [shape: bf16[128,64], index: 5, kind: input, shape index: {}]
  %s6 = inlined_call_operand.vmem [shape: f32[1,64], index: 6, kind: input, shape index: {}]
  %s7 = inlined_call_operand.vmem [shape: bf16[64,1], index: 7, kind: input, shape index: {}]
  %s8 = inlined_call_operand.<no memory space> [shape: f32[1,1], index: 8, kind: input, shape index: {}]
  %s9 = inlined_call_operand.vmem [shape: f32[500,1], index: 9, kind: output, shape index: {}]
  %s10 = sld [smem:[#allocation0]]
  $region117: #{mlp_forward.1} parent=0
    _
  %s12 = ssub.s32 1, %s10
  %s13 = scalar_select 0, %s12, %s10
  %v14 = vstv %s8
  %15 = vst [vmem:[#allocation2] sm:$0x1] %v14
  $region1: #{mlp_forward.1} parent=0
    #allocation3 [shape = 'u8[131072]{0}', space=vmem, size = 0x20000, scoped, tag = 'output window, operand 0']
    loop: start=0, step=1, limit=6
    $region2: #{mlp_forward.1} parent=1 // loop_pre_header
      _
    $region3: #{mlp_forward.1} parent=1 // loop_header
      %s17 = sphi 0, %s21
      %p18 = scmp.ge.s32.totalorder %s17, 6
      %s27 = sphi 0, %s29
      %s30 = sphi 0, %s27
      %s31 = sphi 0, %s30
      %s47 = sphi 0, %s31
      %s51 = sphi 0, %s51
      %s53 = sphi 0, %s51
      %s54 = sphi 0, %s53
      %s68 = sphi 0, %s54
      %s72 = sphi 0, %s72
      %s74 = sphi 0, %s72
      %s75 = sphi 0, %s74
      %s89 = sphi 0, %s75
      %s93 = sphi 0, %s93
      %s95 = sphi 0, %s93
      %s96 = sphi 0, %s95
      %s110 = sphi 0, %s96
      %s114 = sphi 0, %s114
      %s116 = sphi 0, %s114
      %s117 = sphi 0, %s116
      %s131 = sphi 0, %s117
      %s135 = sphi 0, %s135
      %s137 = sphi 0, %s135
      %s138 = sphi 0, %s137
      %s152 = sphi 0, %s138
      %s156 = sphi 0, %s156
      %s158 = sphi 0, %s156
      %s159 = sphi 0, %s158
      %s173 = sphi 0, %s159
      %s177 = sphi 0, %s177
      %s179 = sphi 0, %s177
      %s180 = sphi 0, %s179
      %s194 = sphi 0, %s180
      %s198 = sphi 0, %s198
      %s200 = sphi 0, %s198
      %s201 = sphi 0, %s200
      %s215 = sphi 0, %s201
      %s221 = sphi 0, %s223
      %s224 = sphi 0, %s221
      %s225 = sphi 0, %s224
      %s241 = sphi 0, %s225
    $region4: #{mlp_forward.1} parent=1 // loop_header_branch
      %20 = sbr.rel (%p18) target = $region8
    $region5: #{mlp_forward.1} parent=1 // loop_body
      %s22 = ssub.s32 %s17, 1
      %s23 = ssub.s32 %s17, 2
      %s24 = sadd.s32 %s17, 1
      %s25 = ssub.s32 %s17, %s24
      %p26 = scmp.eq.s32.totalorder %s25, 0
      %s28 = sadd.s32 %s27, 1
      %s29 = scalar_select %p26, %s27, %s28
      %p32 = pneg %p26
      %p33 = scmp.eq.s32.totalorder %s17, 3
      %p34 = por %p32, %p33
      %p35 = scmp.ne.s32.totalorder %s27, %s30
      %p36 = scmp.eq.s32.totalorder %s17, 0
      %p37 = por %p35, %p36
      %p38 = scmp.ne.s32.totalorder %s27, %s30
      %p39 = scmp.eq.s32.totalorder %s22, 3
      %p40 = por %p38, %p39
      %p41 = scmp.ne.s32.totalorder %s30, %s31
      %p42 = scmp.eq.s32.totalorder %s22, 0
      %p43 = por %p41, %p42
      %p44 = scmp.ne.s32.totalorder %s30, %s31
      %p45 = scmp.eq.s32.totalorder %s23, 3
      %p46 = por %p44, %p45
      %p48 = scmp.ne.s32.totalorder %s31, %s47
      %p49 = scmp.eq.s32.totalorder %s23, 0
      %p50 = por %p48, %p49
      %s52 = sadd.s32 %s51, 1
      %p55 = scmp.eq.s32.totalorder %s17, 3
      %p56 = scmp.ne.s32.totalorder %s51, %s53
      %p57 = scmp.eq.s32.totalorder %s17, 0
      %p58 = por %p56, %p57
      %p59 = scmp.ne.s32.totalorder %s51, %s53
      %p60 = scmp.eq.s32.totalorder %s22, 3
      %p61 = por %p59, %p60
      %p62 = scmp.ne.s32.totalorder %s53, %s54
      %p63 = scmp.eq.s32.totalorder %s22, 0
      %p64 = por %p62, %p63
      %p65 = scmp.ne.s32.totalorder %s53, %s54
      %p66 = scmp.eq.s32.totalorder %s23, 3
      %p67 = por %p65, %p66
      %p69 = scmp.ne.s32.totalorder %s54, %s68
      %p70 = scmp.eq.s32.totalorder %s23, 0
      %p71 = por %p69, %p70
      %s73 = sadd.s32 %s72, 1
      %p76 = scmp.eq.s32.totalorder %s17, 3
      %p77 = scmp.ne.s32.totalorder %s72, %s74
      %p78 = scmp.eq.s32.totalorder %s17, 0
      %p79 = por %p77, %p78
      %p80 = scmp.ne.s32.totalorder %s72, %s74
      %p81 = scmp.eq.s32.totalorder %s22, 3
      %p82 = por %p80, %p81
      %p83 = scmp.ne.s32.totalorder %s74, %s75
      %p84 = scmp.eq.s32.totalorder %s22, 0
      %p85 = por %p83, %p84
      %p86 = scmp.ne.s32.totalorder %s74, %s75
      %p87 = scmp.eq.s32.totalorder %s23, 3
      %p88 = por %p86, %p87
      %p90 = scmp.ne.s32.totalorder %s75, %s89
      %p91 = scmp.eq.s32.totalorder %s23, 0
      %p92 = por %p90, %p91
      %s94 = sadd.s32 %s93, 1
      %p97 = scmp.eq.s32.totalorder %s17, 3
      %p98 = scmp.ne.s32.totalorder %s93, %s95
      %p99 = scmp.eq.s32.totalorder %s17, 0
      %p100 = por %p98, %p99
      %p101 = scmp.ne.s32.totalorder %s93, %s95
      %p102 = scmp.eq.s32.totalorder %s22, 3
      %p103 = por %p101, %p102
      %p104 = scmp.ne.s32.totalorder %s95, %s96
      %p105 = scmp.eq.s32.totalorder %s22, 0
      %p106 = por %p104, %p105
      %p107 = scmp.ne.s32.totalorder %s95, %s96
      %p108 = scmp.eq.s32.totalorder %s23, 3
      %p109 = por %p107, %p108
      %p111 = scmp.ne.s32.totalorder %s96, %s110
      %p112 = scmp.eq.s32.totalorder %s23, 0
      %p113 = por %p111, %p112
      %s115 = sadd.s32 %s114, 1
      %p118 = scmp.eq.s32.totalorder %s17, 3
      %p119 = scmp.ne.s32.totalorder %s114, %s116
      %p120 = scmp.eq.s32.totalorder %s17, 0
      %p121 = por %p119, %p120
      %p122 = scmp.ne.s32.totalorder %s114, %s116
      %p123 = scmp.eq.s32.totalorder %s22, 3
      %p124 = por %p122, %p123
      %p125 = scmp.ne.s32.totalorder %s116, %s117
      %p126 = scmp.eq.s32.totalorder %s22, 0
      %p127 = por %p125, %p126
      %p128 = scmp.ne.s32.totalorder %s116, %s117
      %p129 = scmp.eq.s32.totalorder %s23, 3
      %p130 = por %p128, %p129
      %p132 = scmp.ne.s32.totalorder %s117, %s131
      %p133 = scmp.eq.s32.totalorder %s23, 0
      %p134 = por %p132, %p133
      %s136 = sadd.s32 %s135, 1
      %p139 = scmp.eq.s32.totalorder %s17, 3
      %p140 = scmp.ne.s32.totalorder %s135, %s137
      %p141 = scmp.eq.s32.totalorder %s17, 0
      %p142 = por %p140, %p141
      %p143 = scmp.ne.s32.totalorder %s135, %s137
      %p144 = scmp.eq.s32.totalorder %s22, 3
      %p145 = por %p143, %p144
      %p146 = scmp.ne.s32.totalorder %s137, %s138
      %p147 = scmp.eq.s32.totalorder %s22, 0
      %p148 = por %p146, %p147
      %p149 = scmp.ne.s32.totalorder %s137, %s138
      %p150 = scmp.eq.s32.totalorder %s23, 3
      %p151 = por %p149, %p150
      %p153 = scmp.ne.s32.totalorder %s138, %s152
      %p154 = scmp.eq.s32.totalorder %s23, 0
      %p155 = por %p153, %p154
      %s157 = sadd.s32 %s156, 1
      %p160 = scmp.eq.s32.totalorder %s17, 3
      %p161 = scmp.ne.s32.totalorder %s156, %s158
      %p162 = scmp.eq.s32.totalorder %s17, 0
      %p163 = por %p161, %p162
      %p164 = scmp.ne.s32.totalorder %s156, %s158
      %p165 = scmp.eq.s32.totalorder %s22, 3
      %p166 = por %p164, %p165
      %p167 = scmp.ne.s32.totalorder %s158, %s159
      %p168 = scmp.eq.s32.totalorder %s22, 0
      %p169 = por %p167, %p168
      %p170 = scmp.ne.s32.totalorder %s158, %s159
      %p171 = scmp.eq.s32.totalorder %s23, 3
      %p172 = por %p170, %p171
      %p174 = scmp.ne.s32.totalorder %s159, %s173
      %p175 = scmp.eq.s32.totalorder %s23, 0
      %p176 = por %p174, %p175
      %s178 = sadd.s32 %s177, 1
      %p181 = scmp.eq.s32.totalorder %s17, 3
      %p182 = scmp.ne.s32.totalorder %s177, %s179
      %p183 = scmp.eq.s32.totalorder %s17, 0
      %p184 = por %p182, %p183
      %p185 = scmp.ne.s32.totalorder %s177, %s179
      %p186 = scmp.eq.s32.totalorder %s22, 3
      %p187 = por %p185, %p186
      %p188 = scmp.ne.s32.totalorder %s179, %s180
      %p189 = scmp.eq.s32.totalorder %s22, 0
      %p190 = por %p188, %p189
      %p191 = scmp.ne.s32.totalorder %s179, %s180
      %p192 = scmp.eq.s32.totalorder %s23, 3
      %p193 = por %p191, %p192
      %p195 = scmp.ne.s32.totalorder %s180, %s194
      %p196 = scmp.eq.s32.totalorder %s23, 0
      %p197 = por %p195, %p196
      %s199 = sadd.s32 %s198, 1
      %p202 = scmp.eq.s32.totalorder %s17, 3
      %p203 = scmp.ne.s32.totalorder %s198, %s200
      %p204 = scmp.eq.s32.totalorder %s17, 0
      %p205 = por %p203, %p204
      %p206 = scmp.ne.s32.totalorder %s198, %s200
      %p207 = scmp.eq.s32.totalorder %s22, 3
      %p208 = por %p206, %p207
      %p209 = scmp.ne.s32.totalorder %s200, %s201
      %p210 = scmp.eq.s32.totalorder %s22, 0
      %p211 = por %p209, %p210
      %p212 = scmp.ne.s32.totalorder %s200, %s201
      %p213 = scmp.eq.s32.totalorder %s23, 3
      %p214 = por %p212, %p213
      %p216 = scmp.ne.s32.totalorder %s201, %s215
      %p217 = scmp.eq.s32.totalorder %s23, 0
      %p218 = por %p216, %p217
      %s219 = ssub.s32 %s17, %s24
      %p220 = scmp.eq.s32.totalorder %s219, 0
      %s222 = sadd.s32 %s221, 1
      %s223 = scalar_select %p220, %s221, %s222
      %p226 = pneg %p220
      %p227 = scmp.eq.s32.totalorder %s17, 3
      %p228 = por %p226, %p227
      %p229 = scmp.ne.s32.totalorder %s221, %s224
      %p230 = scmp.eq.s32.totalorder %s17, 0
      %p231 = por %p229, %p230
      %p232 = scmp.ne.s32.totalorder %s221, %s224
      %p233 = scmp.eq.s32.totalorder %s22, 3
      %p234 = por %p232, %p233
      %p235 = scmp.ne.s32.totalorder %s224, %s225
      %p236 = scmp.eq.s32.totalorder %s22, 0
      %p237 = por %p235, %p236
      %p238 = scmp.ne.s32.totalorder %s224, %s225
      %p239 = scmp.eq.s32.totalorder %s23, 3
      %p240 = por %p238, %p239
      %p242 = scmp.ne.s32.totalorder %s225, %s241
      %p243 = scmp.eq.s32.totalorder %s23, 0
      %p244 = por %p242, %p243
      %p245 = scmp.le.s32.totalorder 1, %s17
      %p246 = scmp.lt.s32.totalorder %s17, 5
      %p247 = pnand %p245, %p246
      %p248 = pneg %p247
      // Predicated region
      $region9: #{mlp_forward.1} parent=5 // pred_check
        _
      $region10: #{mlp_forward.1} parent=5 // pred_check_branch
        %250 = sbr.rel (%p247) target = $region12
      $region11: #{mlp_forward.1} parent=5 // pred_region
        %s251 = ssub.s32 %s17, 1
        // Predicated region
        $region13: #{mlp_forward.1} parent=11 // pred_check
          %p252 = pneg %p64
        $region14: #{mlp_forward.1} parent=11 // pred_check_branch
          %254 = sbr.rel (%p252) target = $region16
        $region15: #{mlp_forward.1} parent=11 // pred_region
          _
        $region16: #{mlp_forward.1} parent=11 // pred_fallthru
          _
        // Predicated region
        $region17: #{mlp_forward.1} parent=11 // pred_check
          %p255 = pneg %p85
        $region18: #{mlp_forward.1} parent=11 // pred_check_branch
          %257 = sbr.rel (%p255) target = $region20
        $region19: #{mlp_forward.1} parent=11 // pred_region
          _
        $region20: #{mlp_forward.1} parent=11 // pred_fallthru
          _
        // Predicated region
        $region21: #{mlp_forward.1} parent=11 // pred_check
          %p258 = pneg %p106
        $region22: #{mlp_forward.1} parent=11 // pred_check_branch
          %260 = sbr.rel (%p258) target = $region24
        $region23: #{mlp_forward.1} parent=11 // pred_region
          _
        $region24: #{mlp_forward.1} parent=11 // pred_fallthru
          _
        // Predicated region
        $region25: #{mlp_forward.1} parent=11 // pred_check
          %p261 = pneg %p127
        $region26: #{mlp_forward.1} parent=11 // pred_check_branch
          %263 = sbr.rel (%p261) target = $region28
        $region27: #{mlp_forward.1} parent=11 // pred_region
          _
        $region28: #{mlp_forward.1} parent=11 // pred_fallthru
          _
        // Predicated region
        $region29: #{mlp_forward.1} parent=11 // pred_check
          %p264 = pneg %p148
        $region30: #{mlp_forward.1} parent=11 // pred_check_branch
          %266 = sbr.rel (%p264) target = $region32
        $region31: #{mlp_forward.1} parent=11 // pred_region
          _
        $region32: #{mlp_forward.1} parent=11 // pred_fallthru
          _
        // Predicated region
        $region33: #{mlp_forward.1} parent=11 // pred_check
          %p267 = pneg %p169
        $region34: #{mlp_forward.1} parent=11 // pred_check_branch
          %269 = sbr.rel (%p267) target = $region36
        $region35: #{mlp_forward.1} parent=11 // pred_region
          _
        $region36: #{mlp_forward.1} parent=11 // pred_fallthru
          _
        // Predicated region
        $region37: #{mlp_forward.1} parent=11 // pred_check
          %p270 = pneg %p190
        $region38: #{mlp_forward.1} parent=11 // pred_check_branch
          %272 = sbr.rel (%p270) target = $region40
        $region39: #{mlp_forward.1} parent=11 // pred_region
          _
        $region40: #{mlp_forward.1} parent=11 // pred_fallthru
          _
        // Predicated region
        $region41: #{mlp_forward.1} parent=11 // pred_check
          %p273 = pneg %p211
        $region42: #{mlp_forward.1} parent=11 // pred_check_branch
          %275 = sbr.rel (%p273) target = $region44
        $region43: #{mlp_forward.1} parent=11 // pred_region
          _
        $region44: #{mlp_forward.1} parent=11 // pred_fallthru
          _
      $region12: #{mlp_forward.1} parent=5 // pred_fallthru
        _
      %p276 = scmp.lt.s32.totalorder %s17, 4
      // Predicated region
      $region45: #{mlp_forward.1} parent=5 // pred_check
        %p277 = pneg %p276
      $region46: #{mlp_forward.1} parent=5 // pred_check_branch
        %279 = sbr.rel (%p277) target = $region48
      $region47: #{mlp_forward.1} parent=5 // pred_region
        // Predicated region
        $region49: #{mlp_forward.1} parent=47 // pred_check
          %p280 = pneg %p37
        $region50: #{mlp_forward.1} parent=47 // pred_check_branch
          %282 = sbr.rel (%p280) target = $region52
        $region51: #{mlp_forward.1} parent=47 // pred_region
          %s283 = smul.u32 16, %s17
          %s284 = ssub.s32 63, %s283
          %p285 = scmp.lt.s32.totalorder %s284, 16
          %s286 = scalar_select %p285, %s284, 16
          %s287 = smul.u32 128, %s286
          %p288 = scmp.lt.s32.totalorder %s283, 62
          %s289 = scalar_select %p288, %s283, 62
          %s290 = smul.addr %s289, 8
          %s291 = scalar_lea.vmem %s0, %s290
          %s292 = smul.u32 16, %s17
          %s293 = ssub.s32 63, %s292
          %p294 = scmp.lt.s32.totalorder %s293, 16
          %s295 = scalar_select %p294, %s293, 16
          %s296 = smul.u32 128, %s295
        $region52: #{mlp_forward.1} parent=47 // pred_fallthru
          _
      $region48: #{mlp_forward.1} parent=5 // pred_fallthru
        _
      %p297 = scmp.le.s32.totalorder 1, %s17
      %p298 = scmp.lt.s32.totalorder %s17, 5
      %p299 = pnand %p297, %p298
      %p300 = pneg %p299
      // Predicated region
      $region53: #{mlp_forward.1} parent=5 // pred_check
        _
      $region54: #{mlp_forward.1} parent=5 // pred_check_branch
        %302 = sbr.rel (%p299) target = $region56
      $region55: #{mlp_forward.1} parent=5 // pred_region
        %s303 = ssub.s32 %s17, 1
        %s304 = smul.u32 16, %s22
        %s305 = ssub.s32 63, %s304
        %p306 = scmp.lt.s32.totalorder %s305, 16
        %s307 = scalar_select %p306, %s305, 16
        %s308 = smul.u32 128, %s307
        %p309 = scmp.lt.s32.totalorder %s304, 62
        %s310 = scalar_select %p309, %s304, 62
        %s311 = smul.addr %s310, 8
        %s312 = scalar_lea.vmem %s0, %s311
        %p313 = pneg %p43
        %p314 = pneg %p40
        %p315 = pneg %p64
        %p316 = pneg %p61
        %p317 = pneg %p85
        %p318 = pneg %p82
        %p319 = pneg %p106
        %p320 = pneg %p103
        %p321 = pneg %p127
        %p322 = pneg %p124
        %p323 = pneg %p148
        %p324 = pneg %p145
        %p325 = pneg %p169
        %p326 = pneg %p166
        %p327 = pneg %p190
        %p328 = pneg %p187
        %p329 = pneg %p211
        %p330 = pneg %p208
        %p331 = pneg %p237
        %p332 = pneg %p234
        %s333 = sand.u32 %s224, 1
        %s334 = sand.u32 %s224, 1
        %s335 = smul.addr %s334, 128
        %s336 = scalar_lea.vmem [#allocation3], %s335
        %s337 = smul.u32 16, %s22
        %s338 = ssub.s32 63, %s337
        %p339 = scmp.lt.s32.totalorder %s338, 16
        %s340 = scalar_select %p339, %s338, 16
        %s341 = smul.u32 128, %s340
        %p342 = scmp.lt.s32.totalorder %s337, 62
        %s343 = scalar_select %p342, %s337, 62
        %s344 = smul.addr %s343, 8
        %s345 = scalar_lea.vmem %s0, %s344
        %s346 = smul.u32 16, %s22
        %s347 = ssub.s32 63, %s346
        %p348 = scmp.lt.s32.totalorder %s347, 16
        %s349 = scalar_select %p348, %s347, 16
        %s350 = smul.u32 128, %s349
        %s351 = smul.u32 16, %s22
        %s352 = ssub.s32 63, %s351
        %p353 = scmp.lt.s32.totalorder %s352, 16
        %s354 = scalar_select %p353, %s352, 16
        %s355 = smul.u32 128, %s354
        %v357 = vld [vmem:[%s345] sm:$0xff]
        %v358 = vld [vmem:[%s345 + $0x8] sm:$0xff]
        %v359 = vld [vmem:[%s345 + $0x10] sm:$0xff]
        %v360 = vld [vmem:[%s345 + $0x18] sm:$0xff]
        %v361 = vld [vmem:[%s345 + $0x20] sm:$0xff]
        %v362 = vld [vmem:[%s345 + $0x28] sm:$0xff]
        %v363 = vld [vmem:[%s345 + $0x30] sm:$0xff]
        %v364 = vld [vmem:[%s345 + $0x38] sm:$0xff]
        %v365 = vld [vmem:[%s345 + $0x40] sm:$0xff]
        %v366 = vld [vmem:[%s345 + $0x48] sm:$0xff]
        %v367 = vld [vmem:[%s345 + $0x50] sm:$0xff]
        %v368 = vld [vmem:[%s345 + $0x58] sm:$0xff]
        %v369 = vld [vmem:[%s345 + $0x60] sm:$0xff]
        %v370 = vld [vmem:[%s345 + $0x68] sm:$0xff]
        %v371 = vld [vmem:[%s345 + $0x70] sm:$0xff]
        %v372 = vld [vmem:[%s345 + $0x78] sm:$0xff]
        %v373 = vpack.c.bf16 %v358, %v357
        %v374 = vpack.c.bf16 %v360, %v359
        %v375 = vpack.c.bf16 %v362, %v361
        %v376 = vpack.c.bf16 %v364, %v363
        %v377 = vpack.c.bf16 %v366, %v365
        %v378 = vpack.c.bf16 %v368, %v367
        %v379 = vpack.c.bf16 %v370, %v369
        %v380 = vpack.c.bf16 %v372, %v371
        %v381 = vld [vmem:[%s1] sm:$0xff]
        %v382 = vld [vmem:[%s1 + $0x8] sm:$0xff]
        %v383 = vld [vmem:[%s1 + $0x10] sm:$0xff]
        %v384 = vld [vmem:[%s1 + $0x18] sm:$0xff]
        %v385 = vld [vmem:[%s2] sm:$0x3]
        %v387 = vlaneseq
        %v388 = vshrl.u32 %v387, 7
        %v389 = vsub.s32 0, %v388
        %v390 = vrot.slane %v385, %v389
        %v391 = vlaneseq
        %v392 = vshrl.u32 %v391, 7
        %v393 = vsub.s32 1, %v392
        %v394 = vrot.slane %v385, %v393
        %v401 = vunpack.c.l.b16 %v381
        %v402 = vunpack.c.h.b16 %v381
        %v403 = vunpack.c.l.b16 %v382
        %v404 = vunpack.c.h.b16 %v382
        %v405 = vunpack.c.l.b16 %v383
        %v406 = vunpack.c.h.b16 %v383
        %v407 = vunpack.c.l.b16 %v384
        %v408 = vunpack.c.h.b16 %v384
        %v409 = vpack.c.b16 %v403, %v401
        %v410 = vpack.c.b16 %v404, %v402
        %v411 = vpack.c.b16 %v407, %v405
        %v412 = vpack.c.b16 %v408, %v406
        %vm417 = vcmask 261120
        %v419 = vsel %vm417, %v373, 0
        %v422 = vsel %vm417, %v374, 0
        %v425 = vsel %vm417, %v375, 0
        %v428 = vsel %vm417, %v376, 0
        %v431 = vsel %vm417, %v377, 0
        %v434 = vsel %vm417, %v378, 0
        %v437 = vsel %vm417, %v379, 0
        %v440 = vsel %vm417, %v380, 0
        %442 = vmatprep.subr.bf16.mxu0 0
        %443 = vmatpush1.bf16.msra.mxu0 0
        %444 = vmatprep.subr.bf16.mxu0 0
        %445 = vmatpush1.bf16.msra.mxu0 0
        %446 = vmatprep.subr.bf16.mxu0 0
        %447 = vmatpush1.bf16.msra.mxu0 0
        %448 = vmatprep.subr.bf16.mxu0 0
        %449 = vmatpush1.bf16.msra.mxu0 0
        %450 = vmatprep.subr.bf16.mxu0 0
        %451 = vmatpush1.bf16.msra.mxu0 0
        %452 = vmatprep.subr.bf16.mxu0 0
        %453 = vmatpush1.bf16.msra.mxu0 0
        %454 = vmatprep.subr.bf16.mxu0 %v412
        %455 = vmatpush1.bf16.msra.mxu0 %v411
        %456 = vmatprep.subr.bf16.mxu0 %v410
        %457 = vmatpush1.bf16.msra.mxu0 %v409
        %458 = vmatprep.subr.bf16.mxu0 0
        %459 = vmatpush2.bf16.msra.mxu0 0
        %460 = vmatprep.subr.bf16.mxu0 0
        %461 = vmatpush2.bf16.msra.mxu0 0
        %462 = vmatprep.subr.bf16.mxu0 0
        %463 = vmatpush2.bf16.msra.mxu0 0
        %464 = vmatprep.subr.bf16.mxu0 0
        %465 = vmatpush2.bf16.msra.mxu0 0
        %466 = vmatprep.subr.bf16.mxu0 0
        %467 = vmatpush2.bf16.msra.mxu0 0
        %468 = vmatprep.subr.bf16.mxu0 0
        %469 = vmatpush2.bf16.msra.mxu0 0
        %470 = vmatprep.subr.bf16.mxu0 0
        %471 = vmatpush2.bf16.msra.mxu0 0
        %472 = vmatprep.subr.bf16.mxu0 0
        %473 = vmatpush2.bf16.msra.mxu0 0
        %474 = vmatprep.mubr.bf16.mxu0 0
        %475 = vmatmul.mubr.bf16.gmra.mxu0 %v419
        %v476 = vpop.f32.mrf.mxu0
        %v477 = vadd.f32 %v390, %v476
        %v478 = vpop.f32.mrf.mxu0
        %v479 = vadd.f32 %v394, %v478
        %v480 = vpop.f32.mrf.mxu0
        %v481 = vadd.f32 %v390, %v480
        %v482 = vpop.f32.mrf.mxu0
        %v483 = vadd.f32 %v394, %v482
        %484 = vmatprep.mubr.bf16.mxu0 0
        %485 = vmatmul.mubr.bf16.gmra.mxu0 %v422
        %v486 = vpop.f32.mrf.mxu0
        %v487 = vadd.f32 %v390, %v486
        %v488 = vpop.f32.mrf.mxu0
        %v489 = vadd.f32 %v394, %v488
        %v490 = vpop.f32.mrf.mxu0
        %v491 = vadd.f32 %v390, %v490
        %v492 = vpop.f32.mrf.mxu0
        %v493 = vadd.f32 %v394, %v492
        %494 = vmatprep.mubr.bf16.mxu0 0
        %495 = vmatmul.mubr.bf16.gmra.mxu0 %v425
        %v496 = vpop.f32.mrf.mxu0
        %v497 = vadd.f32 %v390, %v496
        %v498 = vpop.f32.mrf.mxu0
        %v499 = vadd.f32 %v394, %v498
        %v500 = vpop.f32.mrf.mxu0
        %v501 = vadd.f32 %v390, %v500
        %v502 = vpop.f32.mrf.mxu0
        %v503 = vadd.f32 %v394, %v502
        %504 = vmatprep.mubr.bf16.mxu0 0
        %505 = vmatmul.mubr.bf16.gmra.mxu0 %v428
        %v506 = vpop.f32.mrf.mxu0
        %v507 = vadd.f32 %v390, %v506
        %v508 = vpop.f32.mrf.mxu0
        %v509 = vadd.f32 %v394, %v508
        %v510 = vpop.f32.mrf.mxu0
        %v511 = vadd.f32 %v390, %v510
        %v512 = vpop.f32.mrf.mxu0
        %v513 = vadd.f32 %v394, %v512
        %514 = vmatprep.mubr.bf16.mxu0 0
        %515 = vmatmul.mubr.bf16.gmra.mxu0 %v431
        %v516 = vpop.f32.mrf.mxu0
        %v517 = vadd.f32 %v390, %v516
        %v518 = vpop.f32.mrf.mxu0
        %v519 = vadd.f32 %v394, %v518
        %v520 = vpop.f32.mrf.mxu0
        %v521 = vadd.f32 %v390, %v520
        %v522 = vpop.f32.mrf.mxu0
        %v523 = vadd.f32 %v394, %v522
        %524 = vmatprep.mubr.bf16.mxu0 0
        %525 = vmatmul.mubr.bf16.gmra.mxu0 %v434
        %v526 = vpop.f32.mrf.mxu0
        %v527 = vadd.f32 %v390, %v526
        %v528 = vpop.f32.mrf.mxu0
        %v529 = vadd.f32 %v394, %v528
        %v530 = vpop.f32.mrf.mxu0
        %v531 = vadd.f32 %v390, %v530
        %v532 = vpop.f32.mrf.mxu0
        %v533 = vadd.f32 %v394, %v532
        %534 = vmatprep.mubr.bf16.mxu0 0
        %535 = vmatmul.mubr.bf16.gmra.mxu0 %v437
        %v536 = vpop.f32.mrf.mxu0
        %v537 = vadd.f32 %v390, %v536
        %v538 = vpop.f32.mrf.mxu0
        %v539 = vadd.f32 %v394, %v538
        %v540 = vpop.f32.mrf.mxu0
        %v541 = vadd.f32 %v390, %v540
        %v542 = vpop.f32.mrf.mxu0
        %v543 = vadd.f32 %v394, %v542
        %544 = vmatprep.mubr.bf16.mxu0 0
        %545 = vmatmul.mubr.bf16.gmra.mxu0 %v440
        %v546 = vpop.f32.mrf.mxu0
        %v547 = vadd.f32 %v390, %v546
        %v548 = vpop.f32.mrf.mxu0
        %v549 = vadd.f32 %v394, %v548
        %v550 = vpop.f32.mrf.mxu0
        %v551 = vadd.f32 %v390, %v550
        %v552 = vpop.f32.mrf.mxu0
        %v553 = vadd.f32 %v394, %v552
        %554 = vdwg.mxu0
        %v555 = vmul.f32 %v477, 0.01
        %v556 = vmul.f32 %v479, 0.01
        %v557 = vmul.f32 %v481, 0.01
        %v558 = vmul.f32 %v483, 0.01
        %v559 = vmul.f32 %v487, 0.01
        %v560 = vmul.f32 %v489, 0.01
        %v561 = vmul.f32 %v491, 0.01
        %v562 = vmul.f32 %v493, 0.01
        %v563 = vmul.f32 %v497, 0.01
        %v564 = vmul.f32 %v499, 0.01
        %v565 = vmul.f32 %v501, 0.01
        %v566 = vmul.f32 %v503, 0.01
        %v567 = vmul.f32 %v507, 0.01
        %v568 = vmul.f32 %v509, 0.01
        %v569 = vmul.f32 %v511, 0.01
        %v570 = vmul.f32 %v513, 0.01
        %v571 = vmul.f32 %v517, 0.01
        %v572 = vmul.f32 %v519, 0.01
        %v573 = vmul.f32 %v521, 0.01
        %v574 = vmul.f32 %v523, 0.01
        %v575 = vmul.f32 %v527, 0.01
        %v576 = vmul.f32 %v529, 0.01
        %v577 = vmul.f32 %v531, 0.01
        %v578 = vmul.f32 %v533, 0.01
        %v579 = vmul.f32 %v537, 0.01
        %v580 = vmul.f32 %v539, 0.01
        %v581 = vmul.f32 %v541, 0.01
        %v582 = vmul.f32 %v543, 0.01
        %v583 = vmul.f32 %v547, 0.01
        %v584 = vmul.f32 %v549, 0.01
        %v585 = vmul.f32 %v551, 0.01
        %v586 = vmul.f32 %v553, 0.01
        %v587 = vmax.f32 %v477, %v555
        %v588 = vmax.f32 %v479, %v556
        %v589 = vmax.f32 %v481, %v557
        %v590 = vmax.f32 %v483, %v558
        %v591 = vmax.f32 %v487, %v559
        %v592 = vmax.f32 %v489, %v560
        %v593 = vmax.f32 %v491, %v561
        %v594 = vmax.f32 %v493, %v562
        %v595 = vmax.f32 %v497, %v563
        %v596 = vmax.f32 %v499, %v564
        %v597 = vmax.f32 %v501, %v565
        %v598 = vmax.f32 %v503, %v566
        %v599 = vmax.f32 %v507, %v567
        %v600 = vmax.f32 %v509, %v568
        %v601 = vmax.f32 %v511, %v569
        %v602 = vmax.f32 %v513, %v570
        %v603 = vmax.f32 %v517, %v571
        %v604 = vmax.f32 %v519, %v572
        %v605 = vmax.f32 %v521, %v573
        %v606 = vmax.f32 %v523, %v574
        %v607 = vmax.f32 %v527, %v575
        %v608 = vmax.f32 %v529, %v576
        %v609 = vmax.f32 %v531, %v577
        %v610 = vmax.f32 %v533, %v578
        %v611 = vmax.f32 %v537, %v579
        %v612 = vmax.f32 %v539, %v580
        %v613 = vmax.f32 %v541, %v581
        %v614 = vmax.f32 %v543, %v582
        %v615 = vmax.f32 %v547, %v583
        %v616 = vmax.f32 %v549, %v584
        %v617 = vmax.f32 %v551, %v585
        %v618 = vmax.f32 %v553, %v586
        %v619 = vpack.c.bf16 %v589, %v587
        %v620 = vpack.c.bf16 %v590, %v588
        %v621 = vpack.c.bf16 %v593, %v591
        %v622 = vpack.c.bf16 %v594, %v592
        %v623 = vpack.c.bf16 %v597, %v595
        %v624 = vpack.c.bf16 %v598, %v596
        %v625 = vpack.c.bf16 %v601, %v599
        %v626 = vpack.c.bf16 %v602, %v600
        %v627 = vpack.c.bf16 %v605, %v603
        %v628 = vpack.c.bf16 %v606, %v604
        %v629 = vpack.c.bf16 %v609, %v607
        %v630 = vpack.c.bf16 %v610, %v608
        %v631 = vpack.c.bf16 %v613, %v611
        %v632 = vpack.c.bf16 %v614, %v612
        %v633 = vpack.c.bf16 %v617, %v615
        %v634 = vpack.c.bf16 %v618, %v616
        %v635 = vld [vmem:[%s3] sm:$0xf]
        %v636 = vld [vmem:[%s3 + $0x4] sm:$0xf]
        %v637 = vld [vmem:[%s3 + $0x8] sm:$0xf]
        %v638 = vld [vmem:[%s3 + $0xc] sm:$0xf]
        %v639 = vld [vmem:[%s3 + $0x10] sm:$0xf]
        %v640 = vld [vmem:[%s3 + $0x14] sm:$0xf]
        %v641 = vld [vmem:[%s3 + $0x18] sm:$0xf]
        %v642 = vld [vmem:[%s3 + $0x1c] sm:$0xf]
        %v643 = vld [vmem:[%s3 + $0x20] sm:$0xf]
        %v644 = vld [vmem:[%s3 + $0x24] sm:$0xf]
        %v645 = vld [vmem:[%s3 + $0x28] sm:$0xf]
        %v646 = vld [vmem:[%s3 + $0x2c] sm:$0xf]
        %v647 = vld [vmem:[%s3 + $0x30] sm:$0xf]
        %v648 = vld [vmem:[%s3 + $0x34] sm:$0xf]
        %v649 = vld [vmem:[%s3 + $0x38] sm:$0xf]
        %v650 = vld [vmem:[%s3 + $0x3c] sm:$0xf]
        %v651 = vld [vmem:[%s3 + $0x40] sm:$0xf]
        %v652 = vld [vmem:[%s3 + $0x44] sm:$0xf]
        %v653 = vld [vmem:[%s3 + $0x48] sm:$0xf]
        %v654 = vld [vmem:[%s3 + $0x4c] sm:$0xf]
        %v655 = vld [vmem:[%s3 + $0x50] sm:$0xf]
        %v656 = vld [vmem:[%s3 + $0x54] sm:$0xf]
        %v657 = vld [vmem:[%s3 + $0x58] sm:$0xf]
        %v658 = vld [vmem:[%s3 + $0x5c] sm:$0xf]
        %v659 = vld [vmem:[%s3 + $0x60] sm:$0xf]
        %v660 = vld [vmem:[%s3 + $0x64] sm:$0xf]
        %v661 = vld [vmem:[%s3 + $0x68] sm:$0xf]
        %v662 = vld [vmem:[%s3 + $0x6c] sm:$0xf]
        %v663 = vld [vmem:[%s3 + $0x70] sm:$0xf]
        %v664 = vld [vmem:[%s3 + $0x74] sm:$0xf]
        %v665 = vld [vmem:[%s3 + $0x78] sm:$0xf]
        %v666 = vld [vmem:[%s3 + $0x7c] sm:$0xf]
        %v667 = vld [vmem:[%s4] sm:$0x1]
        %v669 = vlaneseq
        %v670 = vshrl.u32 %v669, 7
        %v671 = vsub.s32 0, %v670
        %v672 = vrot.slane %v667, %v671
        %v706 = vunpack.c.l.b16 %v635
        %v707 = vunpack.c.l.b16 %v636
        %v708 = vunpack.c.l.b16 %v637
        %v709 = vunpack.c.l.b16 %v638
        %v710 = vunpack.c.l.b16 %v639
        %v711 = vunpack.c.l.b16 %v640
        %v712 = vunpack.c.l.b16 %v641
        %v713 = vunpack.c.l.b16 %v642
        %v714 = vunpack.c.l.b16 %v643
        %v715 = vunpack.c.l.b16 %v644
        %v716 = vunpack.c.l.b16 %v645
        %v717 = vunpack.c.l.b16 %v646
        %v718 = vunpack.c.l.b16 %v647
        %v719 = vunpack.c.l.b16 %v648
        %v720 = vunpack.c.l.b16 %v649
        %v721 = vunpack.c.l.b16 %v650
        %v722 = vunpack.c.l.b16 %v651
        %v723 = vunpack.c.l.b16 %v652
        %v724 = vunpack.c.l.b16 %v653
        %v725 = vunpack.c.l.b16 %v654
        %v726 = vunpack.c.l.b16 %v655
        %v727 = vunpack.c.l.b16 %v656
        %v728 = vunpack.c.l.b16 %v657
        %v729 = vunpack.c.l.b16 %v658
        %v730 = vunpack.c.l.b16 %v659
        %v731 = vunpack.c.l.b16 %v660
        %v732 = vunpack.c.l.b16 %v661
        %v733 = vunpack.c.l.b16 %v662
        %v734 = vunpack.c.l.b16 %v663
        %v735 = vunpack.c.l.b16 %v664
        %v736 = vunpack.c.l.b16 %v665
        %v737 = vunpack.c.l.b16 %v666
        %v738 = vpack.c.b16 %v707, %v706
        %v739 = vpack.c.b16 %v709, %v708
        %v740 = vpack.c.b16 %v711, %v710
        %v741 = vpack.c.b16 %v713, %v712
        %v742 = vpack.c.b16 %v715, %v714
        %v743 = vpack.c.b16 %v717, %v716
        %v744 = vpack.c.b16 %v719, %v718
        %v745 = vpack.c.b16 %v721, %v720
        %v746 = vpack.c.b16 %v723, %v722
        %v747 = vpack.c.b16 %v725, %v724
        %v748 = vpack.c.b16 %v727, %v726
        %v749 = vpack.c.b16 %v729, %v728
        %v750 = vpack.c.b16 %v731, %v730
        %v751 = vpack.c.b16 %v733, %v732
        %v752 = vpack.c.b16 %v735, %v734
        %v753 = vpack.c.b16 %v737, %v736
        %770 = vmatprep.subr.bf16.mxu0 0
        %771 = vmatpush1.bf16.msra.mxu0 %v745
        %772 = vmatprep.subr.bf16.mxu0 0
        %773 = vmatpush1.bf16.msra.mxu0 %v744
        %774 = vmatprep.subr.bf16.mxu0 0
        %775 = vmatpush1.bf16.msra.mxu0 %v743
        %776 = vmatprep.subr.bf16.mxu0 0
        %777 = vmatpush1.bf16.msra.mxu0 %v742
        %778 = vmatprep.subr.bf16.mxu0 0
        %779 = vmatpush1.bf16.msra.mxu0 %v741
        %780 = vmatprep.subr.bf16.mxu0 0
        %781 = vmatpush1.bf16.msra.mxu0 %v740
        %782 = vmatprep.subr.bf16.mxu0 0
        %783 = vmatpush1.bf16.msra.mxu0 %v739
        %784 = vmatprep.subr.bf16.mxu0 0
        %785 = vmatpush1.bf16.msra.mxu0 %v738
        %786 = vmatprep.subr.bf16.mxu0 0
        %787 = vmatpush2.bf16.msra.mxu0 %v753
        %788 = vmatprep.subr.bf16.mxu0 0
        %789 = vmatpush2.bf16.msra.mxu0 %v752
        %790 = vmatprep.subr.bf16.mxu0 0
        %791 = vmatpush2.bf16.msra.mxu0 %v751
        %792 = vmatprep.subr.bf16.mxu0 0
        %793 = vmatpush2.bf16.msra.mxu0 %v750
        %794 = vmatprep.subr.bf16.mxu0 0
        %795 = vmatpush2.bf16.msra.mxu0 %v749
        %796 = vmatprep.subr.bf16.mxu0 0
        %797 = vmatpush2.bf16.msra.mxu0 %v748
        %798 = vmatprep.subr.bf16.mxu0 0
        %799 = vmatpush2.bf16.msra.mxu0 %v747
        %800 = vmatprep.subr.bf16.mxu0 0
        %801 = vmatpush2.bf16.msra.mxu0 %v746
        %802 = vmatprep.mubr.bf16.mxu0 %v620
        %803 = vmatmul.mubr.bf16.gmra.mxu0 %v619
        %v804 = vpop.f32.mrf.mxu0
        %v805 = vadd.f32 %v672, %v804
        %v806 = vpop.f32.mrf.mxu0
        %v807 = vpop.f32.mrf.mxu0
        %v808 = vadd.f32 %v672, %v807
        %v809 = vpop.f32.mrf.mxu0
        %810 = vmatprep.mubr.bf16.mxu0 %v622
        %811 = vmatmul.mubr.bf16.gmra.mxu0 %v621
        %v812 = vpop.f32.mrf.mxu0
        %v813 = vadd.f32 %v672, %v812
        %v814 = vpop.f32.mrf.mxu0
        %v815 = vpop.f32.mrf.mxu0
        %v816 = vadd.f32 %v672, %v815
        %v817 = vpop.f32.mrf.mxu0
        %818 = vmatprep.mubr.bf16.mxu0 %v624
        %819 = vmatmul.mubr.bf16.gmra.mxu0 %v623
        %v820 = vpop.f32.mrf.mxu0
        %v821 = vadd.f32 %v672, %v820
        %v822 = vpop.f32.mrf.mxu0
        %v823 = vpop.f32.mrf.mxu0
        %v824 = vadd.f32 %v672, %v823
        %v825 = vpop.f32.mrf.mxu0
        %826 = vmatprep.mubr.bf16.mxu0 %v626
        %827 = vmatmul.mubr.bf16.gmra.mxu0 %v625
        %v828 = vpop.f32.mrf.mxu0
        %v829 = vadd.f32 %v672, %v828
        %v830 = vpop.f32.mrf.mxu0
        %v831 = vpop.f32.mrf.mxu0
        %v832 = vadd.f32 %v672, %v831
        %v833 = vpop.f32.mrf.mxu0
        %834 = vmatprep.mubr.bf16.mxu0 %v628
        %835 = vmatmul.mubr.bf16.gmra.mxu0 %v627
        %v836 = vpop.f32.mrf.mxu0
        %v837 = vadd.f32 %v672, %v836
        %v838 = vpop.f32.mrf.mxu0
        %v839 = vpop.f32.mrf.mxu0
        %v840 = vadd.f32 %v672, %v839
        %v841 = vpop.f32.mrf.mxu0
        %842 = vmatprep.mubr.bf16.mxu0 %v630
        %843 = vmatmul.mubr.bf16.gmra.mxu0 %v629
        %v844 = vpop.f32.mrf.mxu0
        %v845 = vadd.f32 %v672, %v844
        %v846 = vpop.f32.mrf.mxu0
        %v847 = vpop.f32.mrf.mxu0
        %v848 = vadd.f32 %v672, %v847
        %v849 = vpop.f32.mrf.mxu0
        %850 = vmatprep.mubr.bf16.mxu0 %v632
        %851 = vmatmul.mubr.bf16.gmra.mxu0 %v631
        %v852 = vpop.f32.mrf.mxu0
        %v853 = vadd.f32 %v672, %v852
        %v854 = vpop.f32.mrf.mxu0
        %v855 = vpop.f32.mrf.mxu0
        %v856 = vadd.f32 %v672, %v855
        %v857 = vpop.f32.mrf.mxu0
        %858 = vmatprep.mubr.bf16.mxu0 %v634
        %859 = vmatmul.mubr.bf16.gmra.mxu0 %v633
        %v860 = vpop.f32.mrf.mxu0
        %v861 = vadd.f32 %v672, %v860
        %v862 = vpop.f32.mrf.mxu0
        %v863 = vpop.f32.mrf.mxu0
        %v864 = vadd.f32 %v672, %v863
        %v865 = vpop.f32.mrf.mxu0
        %866 = vdwg.mxu0
        %v867 = vmul.f32 %v805, 0.01
        %v868 = vmul.f32 %v808, 0.01
        %v869 = vmul.f32 %v813, 0.01
        %v870 = vmul.f32 %v816, 0.01
        %v871 = vmul.f32 %v821, 0.01
        %v872 = vmul.f32 %v824, 0.01
        %v873 = vmul.f32 %v829, 0.01
        %v874 = vmul.f32 %v832, 0.01
        %v875 = vmul.f32 %v837, 0.01
        %v876 = vmul.f32 %v840, 0.01
        %v877 = vmul.f32 %v845, 0.01
        %v878 = vmul.f32 %v848, 0.01
        %v879 = vmul.f32 %v853, 0.01
        %v880 = vmul.f32 %v856, 0.01
        %v881 = vmul.f32 %v861, 0.01
        %v882 = vmul.f32 %v864, 0.01
        %v883 = vmax.f32 %v805, %v867
        %v884 = vmax.f32 %v808, %v868
        %v885 = vmax.f32 %v813, %v869
        %v886 = vmax.f32 %v816, %v870
        %v887 = vmax.f32 %v821, %v871
        %v888 = vmax.f32 %v824, %v872
        %v889 = vmax.f32 %v829, %v873
        %v890 = vmax.f32 %v832, %v874
        %v891 = vmax.f32 %v837, %v875
        %v892 = vmax.f32 %v840, %v876
        %v893 = vmax.f32 %v845, %v877
        %v894 = vmax.f32 %v848, %v878
        %v895 = vmax.f32 %v853, %v879
        %v896 = vmax.f32 %v856, %v880
        %v897 = vmax.f32 %v861, %v881
        %v898 = vmax.f32 %v864, %v882
        %v899 = vpack.c.bf16 %v884, %v883
        %v900 = vpack.c.bf16 %v886, %v885
        %v901 = vpack.c.bf16 %v888, %v887
        %v902 = vpack.c.bf16 %v890, %v889
        %v903 = vpack.c.bf16 %v892, %v891
        %v904 = vpack.c.bf16 %v894, %v893
        %v905 = vpack.c.bf16 %v896, %v895
        %v906 = vpack.c.bf16 %v898, %v897
        %v907 = vld [vmem:[%s5] sm:$0xf]
        %v908 = vld [vmem:[%s5 + $0x4] sm:$0xf]
        %v909 = vld [vmem:[%s5 + $0x8] sm:$0xf]
        %v910 = vld [vmem:[%s5 + $0xc] sm:$0xf]
        %v911 = vld [vmem:[%s5 + $0x10] sm:$0xf]
        %v912 = vld [vmem:[%s5 + $0x14] sm:$0xf]
        %v913 = vld [vmem:[%s5 + $0x18] sm:$0xf]
        %v914 = vld [vmem:[%s5 + $0x1c] sm:$0xf]
        %v915 = vld [vmem:[%s5 + $0x20] sm:$0xf]
        %v916 = vld [vmem:[%s5 + $0x24] sm:$0xf]
        %v917 = vld [vmem:[%s5 + $0x28] sm:$0xf]
        %v918 = vld [vmem:[%s5 + $0x2c] sm:$0xf]
        %v919 = vld [vmem:[%s5 + $0x30] sm:$0xf]
        %v920 = vld [vmem:[%s5 + $0x34] sm:$0xf]
        %v921 = vld [vmem:[%s5 + $0x38] sm:$0xf]
        %v922 = vld [vmem:[%s5 + $0x3c] sm:$0xf]
        %v923 = vld [vmem:[%s6] sm:$0x1]
        %v925 = vlaneseq
        %v926 = vshrl.u32 %v925, 7
        %v927 = vsub.s32 0, %v926
        %v928 = vrot.slane %v923, %v927
        %v946 = vunpack.c.l.b16 %v907
        %v947 = vunpack.c.l.b16 %v908
        %v948 = vunpack.c.l.b16 %v909
        %v949 = vunpack.c.l.b16 %v910
        %v950 = vunpack.c.l.b16 %v911
        %v951 = vunpack.c.l.b16 %v912
        %v952 = vunpack.c.l.b16 %v913
        %v953 = vunpack.c.l.b16 %v914
        %v954 = vunpack.c.l.b16 %v915
        %v955 = vunpack.c.l.b16 %v916
        %v956 = vunpack.c.l.b16 %v917
        %v957 = vunpack.c.l.b16 %v918
        %v958 = vunpack.c.l.b16 %v919
        %v959 = vunpack.c.l.b16 %v920
        %v960 = vunpack.c.l.b16 %v921
        %v961 = vunpack.c.l.b16 %v922
        %v962 = vpack.c.b16 %v947, %v946
        %v963 = vpack.c.b16 %v949, %v948
        %v964 = vpack.c.b16 %v951, %v950
        %v965 = vpack.c.b16 %v953, %v952
        %v966 = vpack.c.b16 %v955, %v954
        %v967 = vpack.c.b16 %v957, %v956
        %v968 = vpack.c.b16 %v959, %v958
        %v969 = vpack.c.b16 %v961, %v960
        %978 = vmatprep.subr.bf16.mxu0 0
        %979 = vmatpush1.bf16.msra.mxu0 %v969
        %980 = vmatprep.subr.bf16.mxu0 0
        %981 = vmatpush1.bf16.msra.mxu0 %v968
        %982 = vmatprep.subr.bf16.mxu0 0
        %983 = vmatpush1.bf16.msra.mxu0 %v967
        %984 = vmatprep.subr.bf16.mxu0 0
        %985 = vmatpush1.bf16.msra.mxu0 %v966
        %986 = vmatprep.subr.bf16.mxu0 0
        %987 = vmatpush1.bf16.msra.mxu0 %v965
        %988 = vmatprep.subr.bf16.mxu0 0
        %989 = vmatpush1.bf16.msra.mxu0 %v964
        %990 = vmatprep.subr.bf16.mxu0 0
        %991 = vmatpush1.bf16.msra.mxu0 %v963
        %992 = vmatprep.subr.bf16.mxu0 0
        %993 = vmatpush1.bf16.msra.mxu0 %v962
        %994 = vmatprep.subr.bf16.mxu0 0
        %995 = vmatpush2.bf16.msra.mxu0 0
        %996 = vmatprep.subr.bf16.mxu0 0
        %997 = vmatpush2.bf16.msra.mxu0 0
        %998 = vmatprep.subr.bf16.mxu0 0
        %999 = vmatpush2.bf16.msra.mxu0 0
        %1000 = vmatprep.subr.bf16.mxu0 0
        %1001 = vmatpush2.bf16.msra.mxu0 0
        %1002 = vmatprep.subr.bf16.mxu0 0
        %1003 = vmatpush2.bf16.msra.mxu0 0
        %1004 = vmatprep.subr.bf16.mxu0 0
        %1005 = vmatpush2.bf16.msra.mxu0 0
        %1006 = vmatprep.subr.bf16.mxu0 0
        %1007 = vmatpush2.bf16.msra.mxu0 0
        %1008 = vmatprep.subr.bf16.mxu0 0
        %1009 = vmatpush2.bf16.msra.mxu0 0
        %1010 = vmatprep.mubr.bf16.mxu0 0
        %1011 = vmatmul.mubr.bf16.gmra.mxu0 %v899
        %v1012 = vpop.f32.mrf.mxu0
        %v1013 = vadd.f32 %v928, %v1012
        %v1014 = vpop.f32.mrf.mxu0
        %v1015 = vpop.f32.mrf.mxu0
        %v1016 = vadd.f32 %v928, %v1015
        %v1017 = vpop.f32.mrf.mxu0
        %1018 = vmatprep.mubr.bf16.mxu0 0
        %1019 = vmatmul.mubr.bf16.gmra.mxu0 %v900
        %v1020 = vpop.f32.mrf.mxu0
        %v1021 = vadd.f32 %v928, %v1020
        %v1022 = vpop.f32.mrf.mxu0
        %v1023 = vpop.f32.mrf.mxu0
        %v1024 = vadd.f32 %v928, %v1023
        %v1025 = vpop.f32.mrf.mxu0
        %1026 = vmatprep.mubr.bf16.mxu0 0
        %1027 = vmatmul.mubr.bf16.gmra.mxu0 %v901
        %v1028 = vpop.f32.mrf.mxu0
        %v1029 = vadd.f32 %v928, %v1028
        %v1030 = vpop.f32.mrf.mxu0
        %v1031 = vpop.f32.mrf.mxu0
        %v1032 = vadd.f32 %v928, %v1031
        %v1033 = vpop.f32.mrf.mxu0
        %1034 = vmatprep.mubr.bf16.mxu0 0
        %1035 = vmatmul.mubr.bf16.gmra.mxu0 %v902
        %v1036 = vpop.f32.mrf.mxu0
        %v1037 = vadd.f32 %v928, %v1036
        %v1038 = vpop.f32.mrf.mxu0
        %v1039 = vpop.f32.mrf.mxu0
        %v1040 = vadd.f32 %v928, %v1039
        %v1041 = vpop.f32.mrf.mxu0
        %1042 = vmatprep.mubr.bf16.mxu0 0
        %1043 = vmatmul.mubr.bf16.gmra.mxu0 %v903
        %v1044 = vpop.f32.mrf.mxu0
        %v1045 = vadd.f32 %v928, %v1044
        %v1046 = vpop.f32.mrf.mxu0
        %v1047 = vpop.f32.mrf.mxu0
        %v1048 = vadd.f32 %v928, %v1047
        %v1049 = vpop.f32.mrf.mxu0
        %1050 = vmatprep.mubr.bf16.mxu0 0
        %1051 = vmatmul.mubr.bf16.gmra.mxu0 %v904
        %v1052 = vpop.f32.mrf.mxu0
        %v1053 = vadd.f32 %v928, %v1052
        %v1054 = vpop.f32.mrf.mxu0
        %v1055 = vpop.f32.mrf.mxu0
        %v1056 = vadd.f32 %v928, %v1055
        %v1057 = vpop.f32.mrf.mxu0
        %1058 = vmatprep.mubr.bf16.mxu0 0
        %1059 = vmatmul.mubr.bf16.gmra.mxu0 %v905
        %v1060 = vpop.f32.mrf.mxu0
        %v1061 = vadd.f32 %v928, %v1060
        %v1062 = vpop.f32.mrf.mxu0
        %v1063 = vpop.f32.mrf.mxu0
        %v1064 = vadd.f32 %v928, %v1063
        %v1065 = vpop.f32.mrf.mxu0
        %1066 = vmatprep.mubr.bf16.mxu0 0
        %1067 = vmatmul.mubr.bf16.gmra.mxu0 %v906
        %v1068 = vpop.f32.mrf.mxu0
        %v1069 = vadd.f32 %v928, %v1068
        %v1070 = vpop.f32.mrf.mxu0
        %v1071 = vpop.f32.mrf.mxu0
        %v1072 = vadd.f32 %v928, %v1071
        %v1073 = vpop.f32.mrf.mxu0
        %1074 = vdwg.mxu0
        %v1075 = vmul.f32 %v1013, 0.01
        %v1076 = vmul.f32 %v1016, 0.01
        %v1077 = vmul.f32 %v1021, 0.01
        %v1078 = vmul.f32 %v1024, 0.01
        %v1079 = vmul.f32 %v1029, 0.01
        %v1080 = vmul.f32 %v1032, 0.01
        %v1081 = vmul.f32 %v1037, 0.01
        %v1082 = vmul.f32 %v1040, 0.01
        %v1083 = vmul.f32 %v1045, 0.01
        %v1084 = vmul.f32 %v1048, 0.01
        %v1085 = vmul.f32 %v1053, 0.01
        %v1086 = vmul.f32 %v1056, 0.01
        %v1087 = vmul.f32 %v1061, 0.01
        %v1088 = vmul.f32 %v1064, 0.01
        %v1089 = vmul.f32 %v1069, 0.01
        %v1090 = vmul.f32 %v1072, 0.01
        %v1091 = vmax.f32 %v1013, %v1075
        %v1092 = vmax.f32 %v1016, %v1076
        %v1093 = vmax.f32 %v1021, %v1077
        %v1094 = vmax.f32 %v1024, %v1078
        %v1095 = vmax.f32 %v1029, %v1079
        %v1096 = vmax.f32 %v1032, %v1080
        %v1097 = vmax.f32 %v1037, %v1081
        %v1098 = vmax.f32 %v1040, %v1082
        %v1099 = vmax.f32 %v1045, %v1083
        %v1100 = vmax.f32 %v1048, %v1084
        %v1101 = vmax.f32 %v1053, %v1085
        %v1102 = vmax.f32 %v1056, %v1086
        %v1103 = vmax.f32 %v1061, %v1087
        %v1104 = vmax.f32 %v1064, %v1088
        %v1105 = vmax.f32 %v1069, %v1089
        %v1106 = vmax.f32 %v1072, %v1090
        %v1107 = vpack.c.bf16 %v1092, %v1091
        %v1108 = vpack.c.bf16 %v1094, %v1093
        %v1109 = vpack.c.bf16 %v1096, %v1095
        %v1110 = vpack.c.bf16 %v1098, %v1097
        %v1111 = vpack.c.bf16 %v1100, %v1099
        %v1112 = vpack.c.bf16 %v1102, %v1101
        %v1113 = vpack.c.bf16 %v1104, %v1103
        %v1114 = vpack.c.bf16 %v1106, %v1105
        %v1115 = vld [vmem:[%s7] sm:$0xf]
        %v1116 = vld [vmem:[%s7 + $0x4] sm:$0xf]
        %v1117 = vld [vmem:[%s7 + $0x8] sm:$0xf]
        %v1118 = vld [vmem:[%s7 + $0xc] sm:$0xf]
        %v1119 = vld [vmem:[%s7 + $0x10] sm:$0xf]
        %v1120 = vld [vmem:[%s7 + $0x14] sm:$0xf]
        %v1121 = vld [vmem:[%s7 + $0x18] sm:$0xf]
        %v1122 = vld [vmem:[%s7 + $0x1c] sm:$0xf]
        %v1123 = vld [vmem:[#allocation2] sm:$0x1]
        %v1125 = vlaneseq
        %v1126 = vshrl.u32 %v1125, 7
        %v1127 = vsub.s32 0, %v1126
        %v1128 = vrot.slane %v1123, %v1127
        %v1138 = vunpack.c.l.b16 %v1115
        %v1139 = vunpack.c.l.b16 %v1116
        %v1140 = vunpack.c.l.b16 %v1117
        %v1141 = vunpack.c.l.b16 %v1118
        %v1142 = vunpack.c.l.b16 %v1119
        %v1143 = vunpack.c.l.b16 %v1120
        %v1144 = vunpack.c.l.b16 %v1121
        %v1145 = vunpack.c.l.b16 %v1122
        %v1146 = vpack.c.b16 %v1139, %v1138
        %v1147 = vpack.c.b16 %v1141, %v1140
        %v1148 = vpack.c.b16 %v1143, %v1142
        %v1149 = vpack.c.b16 %v1145, %v1144
        %vm1154 = vcmask 523264
        %v1156 = vsel %vm1154, %v1107, 0
        %v1159 = vsel %vm1154, %v1108, 0
        %v1162 = vsel %vm1154, %v1109, 0
        %v1165 = vsel %vm1154, %v1110, 0
        %v1168 = vsel %vm1154, %v1111, 0
        %v1171 = vsel %vm1154, %v1112, 0
        %v1174 = vsel %vm1154, %v1113, 0
        %v1177 = vsel %vm1154, %v1114, 0
        %1179 = vmatprep.subr.bf16.mxu0 0
        %1180 = vmatpush1.bf16.msra.mxu0 0
        %1181 = vmatprep.subr.bf16.mxu0 0
        %1182 = vmatpush1.bf16.msra.mxu0 0
        %1183 = vmatprep.subr.bf16.mxu0 0
        %1184 = vmatpush1.bf16.msra.mxu0 0
        %1185 = vmatprep.subr.bf16.mxu0 0
        %1186 = vmatpush1.bf16.msra.mxu0 0
        %1187 = vmatprep.subr.bf16.mxu0 0
        %1188 = vmatpush1.bf16.msra.mxu0 %v1149
        %1189 = vmatprep.subr.bf16.mxu0 0
        %1190 = vmatpush1.bf16.msra.mxu0 %v1148
        %1191 = vmatprep.subr.bf16.mxu0 0
        %1192 = vmatpush1.bf16.msra.mxu0 %v1147
        %1193 = vmatprep.subr.bf16.mxu0 0
        %1194 = vmatpush1.bf16.msra.mxu0 %v1146
        %1195 = vmatprep.subr.bf16.mxu0 0
        %1196 = vmatpush2.bf16.msra.mxu0 0
        %1197 = vmatprep.subr.bf16.mxu0 0
        %1198 = vmatpush2.bf16.msra.mxu0 0
        %1199 = vmatprep.subr.bf16.mxu0 0
        %1200 = vmatpush2.bf16.msra.mxu0 0
        %1201 = vmatprep.subr.bf16.mxu0 0
        %1202 = vmatpush2.bf16.msra.mxu0 0
        %1203 = vmatprep.subr.bf16.mxu0 0
        %1204 = vmatpush2.bf16.msra.mxu0 0
        %1205 = vmatprep.subr.bf16.mxu0 0
        %1206 = vmatpush2.bf16.msra.mxu0 0
        %1207 = vmatprep.subr.bf16.mxu0 0
        %1208 = vmatpush2.bf16.msra.mxu0 0
        %1209 = vmatprep.subr.bf16.mxu0 0
        %1210 = vmatpush2.bf16.msra.mxu0 0
        %1211 = vmatprep.mubr.bf16.mxu0 0
        %1212 = vmatmul.mubr.bf16.gmra.mxu0 %v1156
        %v1213 = vpop.f32.mrf.mxu0
        %v1214 = vadd.f32 %v1128, %v1213
        %v1215 = vpop.f32.mrf.mxu0
        %v1216 = vpop.f32.mrf.mxu0
        %v1217 = vadd.f32 %v1128, %v1216
        %v1218 = vpop.f32.mrf.mxu0
        %1219 = vmatprep.mubr.bf16.mxu0 0
        %1220 = vmatmul.mubr.bf16.gmra.mxu0 %v1159
        %v1221 = vpop.f32.mrf.mxu0
        %v1222 = vadd.f32 %v1128, %v1221
        %v1223 = vpop.f32.mrf.mxu0
        %v1224 = vpop.f32.mrf.mxu0
        %v1225 = vadd.f32 %v1128, %v1224
        %v1226 = vpop.f32.mrf.mxu0
        %1227 = vmatprep.mubr.bf16.mxu0 0
        %1228 = vmatmul.mubr.bf16.gmra.mxu0 %v1162
        %v1229 = vpop.f32.mrf.mxu0
        %v1230 = vadd.f32 %v1128, %v1229
        %v1231 = vpop.f32.mrf.mxu0
        %v1232 = vpop.f32.mrf.mxu0
        %v1233 = vadd.f32 %v1128, %v1232
        %v1234 = vpop.f32.mrf.mxu0
        %1235 = vmatprep.mubr.bf16.mxu0 0
        %1236 = vmatmul.mubr.bf16.gmra.mxu0 %v1165
        %v1237 = vpop.f32.mrf.mxu0
        %v1238 = vadd.f32 %v1128, %v1237
        %v1239 = vpop.f32.mrf.mxu0
        %v1240 = vpop.f32.mrf.mxu0
        %v1241 = vadd.f32 %v1128, %v1240
        %v1242 = vpop.f32.mrf.mxu0
        %1243 = vmatprep.mubr.bf16.mxu0 0
        %1244 = vmatmul.mubr.bf16.gmra.mxu0 %v1168
        %v1245 = vpop.f32.mrf.mxu0
        %v1246 = vadd.f32 %v1128, %v1245
        %v1247 = vpop.f32.mrf.mxu0
        %v1248 = vpop.f32.mrf.mxu0
        %v1249 = vadd.f32 %v1128, %v1248
        %v1250 = vpop.f32.mrf.mxu0
        %1251 = vmatprep.mubr.bf16.mxu0 0
        %1252 = vmatmul.mubr.bf16.gmra.mxu0 %v1171
        %v1253 = vpop.f32.mrf.mxu0
        %v1254 = vadd.f32 %v1128, %v1253
        %v1255 = vpop.f32.mrf.mxu0
        %v1256 = vpop.f32.mrf.mxu0
        %v1257 = vadd.f32 %v1128, %v1256
        %v1258 = vpop.f32.mrf.mxu0
        %1259 = vmatprep.mubr.bf16.mxu0 0
        %1260 = vmatmul.mubr.bf16.gmra.mxu0 %v1174
        %v1261 = vpop.f32.mrf.mxu0
        %v1262 = vadd.f32 %v1128, %v1261
        %v1263 = vpop.f32.mrf.mxu0
        %v1264 = vpop.f32.mrf.mxu0
        %v1265 = vadd.f32 %v1128, %v1264
        %v1266 = vpop.f32.mrf.mxu0
        %1267 = vmatprep.mubr.bf16.mxu0 0
        %1268 = vmatmul.mubr.bf16.gmra.mxu0 %v1177
        %v1269 = vpop.f32.mrf.mxu0
        %v1270 = vadd.f32 %v1128, %v1269
        %v1271 = vpop.f32.mrf.mxu0
        %v1272 = vpop.f32.mrf.mxu0
        %v1273 = vadd.f32 %v1128, %v1272
        %v1274 = vpop.f32.mrf.mxu0
        %1275 = vdwg.mxu0
        %v1276 = vsub.f32 0.0, %v1214
        %v1277 = vsub.f32 0.0, %v1217
        %v1278 = vsub.f32 0.0, %v1222
        %v1279 = vsub.f32 0.0, %v1225
        %v1280 = vsub.f32 0.0, %v1230
        %v1281 = vsub.f32 0.0, %v1233
        %v1282 = vsub.f32 0.0, %v1238
        %v1283 = vsub.f32 0.0, %v1241
        %v1284 = vsub.f32 0.0, %v1246
        %v1285 = vsub.f32 0.0, %v1249
        %v1286 = vsub.f32 0.0, %v1254
        %v1287 = vsub.f32 0.0, %v1257
        %v1288 = vsub.f32 0.0, %v1262
        %v1289 = vsub.f32 0.0, %v1265
        %v1290 = vsub.f32 0.0, %v1270
        %v1291 = vsub.f32 0.0, %v1273
        %v1292 = vmul.f32 %v1276, 1.442695
        %v1293 = vpow.pop %v1292
        %v1294 = vmul.f32 %v1277, 1.442695
        %v1295 = vpow.pop %v1294
        %v1296 = vmul.f32 %v1278, 1.442695
        %v1297 = vpow.pop %v1296
        %v1298 = vmul.f32 %v1279, 1.442695
        %v1299 = vpow.pop %v1298
        %v1300 = vmul.f32 %v1280, 1.442695
        %v1301 = vpow.pop %v1300
        %v1302 = vmul.f32 %v1281, 1.442695
        %v1303 = vpow.pop %v1302
        %v1304 = vmul.f32 %v1282, 1.442695
        %v1305 = vpow.pop %v1304
        %v1306 = vmul.f32 %v1283, 1.442695
        %v1307 = vpow.pop %v1306
        %v1308 = vmul.f32 %v1284, 1.442695
        %v1309 = vpow.pop %v1308
        %v1310 = vmul.f32 %v1285, 1.442695
        %v1311 = vpow.pop %v1310
        %v1312 = vmul.f32 %v1286, 1.442695
        %v1313 = vpow.pop %v1312
        %v1314 = vmul.f32 %v1287, 1.442695
        %v1315 = vpow.pop %v1314
        %v1316 = vmul.f32 %v1288, 1.442695
        %v1317 = vpow.pop %v1316
        %v1318 = vmul.f32 %v1289, 1.442695
        %v1319 = vpow.pop %v1318
        %v1320 = vmul.f32 %v1290, 1.442695
        %v1321 = vpow.pop %v1320
        %v1322 = vmul.f32 %v1291, 1.442695
        %v1323 = vpow.pop %v1322
        %v1324 = vadd.f32 %v1293, 1.0
        %v1325 = vadd.f32 %v1295, 1.0
        %v1326 = vadd.f32 %v1297, 1.0
        %v1327 = vadd.f32 %v1299, 1.0
        %v1328 = vadd.f32 %v1301, 1.0
        %v1329 = vadd.f32 %v1303, 1.0
        %v1330 = vadd.f32 %v1305, 1.0
        %v1331 = vadd.f32 %v1307, 1.0
        %v1332 = vadd.f32 %v1309, 1.0
        %v1333 = vadd.f32 %v1311, 1.0
        %v1334 = vadd.f32 %v1313, 1.0
        %v1335 = vadd.f32 %v1315, 1.0
        %v1336 = vadd.f32 %v1317, 1.0
        %v1337 = vadd.f32 %v1319, 1.0
        %v1338 = vadd.f32 %v1321, 1.0
        %v1339 = vadd.f32 %v1323, 1.0
        %v1340 = vrcp.pop %v1324
        %v1341 = vrcp.pop %v1325
        %v1342 = vrcp.pop %v1326
        %v1343 = vrcp.pop %v1327
        %v1344 = vrcp.pop %v1328
        %v1345 = vrcp.pop %v1329
        %v1346 = vrcp.pop %v1330
        %v1347 = vrcp.pop %v1331
        %v1348 = vrcp.pop %v1332
        %v1349 = vrcp.pop %v1333
        %v1350 = vrcp.pop %v1334
        %v1351 = vrcp.pop %v1335
        %v1352 = vrcp.pop %v1336
        %v1353 = vrcp.pop %v1337
        %v1354 = vrcp.pop %v1338
        %v1355 = vrcp.pop %v1339
        %vm1356 = vcmask 7168
        %1357 = vst.msk [vmem:[%s336] sm:$0xff] %vm1356, %v1340
        %1358 = vst.msk [vmem:[%s336 + $0x8] sm:$0xff] %vm1356, %v1341
        %1359 = vst.msk [vmem:[%s336 + $0x10] sm:$0xff] %vm1356, %v1342
        %1360 = vst.msk [vmem:[%s336 + $0x18] sm:$0xff] %vm1356, %v1343
        %1361 = vst.msk [vmem:[%s336 + $0x20] sm:$0xff] %vm1356, %v1344
        %1362 = vst.msk [vmem:[%s336 + $0x28] sm:$0xff] %vm1356, %v1345
        %1363 = vst.msk [vmem:[%s336 + $0x30] sm:$0xff] %vm1356, %v1346
        %1364 = vst.msk [vmem:[%s336 + $0x38] sm:$0xff] %vm1356, %v1347
        %1365 = vst.msk [vmem:[%s336 + $0x40] sm:$0xff] %vm1356, %v1348
        %1366 = vst.msk [vmem:[%s336 + $0x48] sm:$0xff] %vm1356, %v1349
        %1367 = vst.msk [vmem:[%s336 + $0x50] sm:$0xff] %vm1356, %v1350
        %1368 = vst.msk [vmem:[%s336 + $0x58] sm:$0xff] %vm1356, %v1351
        %1369 = vst.msk [vmem:[%s336 + $0x60] sm:$0xff] %vm1356, %v1352
        %1370 = vst.msk [vmem:[%s336 + $0x68] sm:$0xff] %vm1356, %v1353
        %1371 = vst.msk [vmem:[%s336 + $0x70] sm:$0xff] %vm1356, %v1354
        %1372 = vst.msk [vmem:[%s336 + $0x78] sm:$0xff] %vm1356, %v1355
        %s1373 = sand.u32 %s224, 1
        %s1374 = sand.u32 %s224, 1
        %s1375 = smul.addr %s1374, 128
        %s1376 = scalar_lea.vmem [#allocation3], %s1375
        // Predicated region
        $region57: #{mlp_forward.1} parent=55 // pred_check
          %p1377 = pneg %p234
        $region58: #{mlp_forward.1} parent=55 // pred_check_branch
          %1379 = sbr.rel (%p1377) target = $region60
        $region59: #{mlp_forward.1} parent=55 // pred_region
          %s1380 = smul.u32 16, %s22
          %s1381 = ssub.s32 63, %s1380
          %p1382 = scmp.lt.s32.totalorder %s1381, 16
          %s1383 = scalar_select %p1382, %s1381, 16
          %s1384 = smul.u32 128, %s1383
          %p1385 = scmp.ne.s32.totalorder 0, %s1384
          %s1386 = smul.addr %s1380, 8
          %s1387 = scalar_lea.vmem %s9, %s1386
          // Predicated region
          $region61: #{mlp_forward.1} parent=59 // pred_check
            %p1388 = pneg %p1385
          $region62: #{mlp_forward.1} parent=59 // pred_check_branch
            %1390 = sbr.rel (%p1388) target = $region64
          $region63: #{mlp_forward.1} parent=59 // pred_region
            // Predicated region
            $region65: #{mlp_forward.1} parent=63 // pred_check
              _
            $region66: #{mlp_forward.1} parent=63 // pred_check_branch
              %1392 = sbr.rel (0) target = $region68
            $region67: #{mlp_forward.1} parent=63 // pred_region
              // Predicated region
              $region87: #{mlp_forward.1} parent=67 // pred_check
                _
              $region88: #{mlp_forward.1} parent=67 // pred_check_branch
                %1472 = sbr.rel (0) target = $region90
              $region89: #{mlp_forward.1} parent=67 // pred_region
                %s1473 = sshrl.u32 %s1383, 4
                // While loop
                $region91: #{mlp_forward.1} parent=89 // loop_pre_header
                  _
                $region92: #{mlp_forward.1} parent=89 // loop_header
                  %s1475 = sphi 0, %s1477
                  %p1476 = scmp.ge.s32.totalorder %s1475, %s1473
                  %s1480 = sphi 0, %s1517
                  %s1481 = sphi %s1376, %s1520
                  %s1482 = sphi %s1387, %s1521
                $region93: #{mlp_forward.1} parent=89 // loop_header_branch
                  %1479 = sbr.rel (%p1476) target = $region97
                $region94: #{mlp_forward.1} parent=89 // loop_body
                  %v1483 = vld [vmem:[%s1481] sm:$0xff]
                  %1484 = vst [vmem:[%s1482] sm:$0xff] %v1483
                  %v1485 = vld [vmem:[%s1481 + $0x8] sm:$0xff]
                  %1486 = vst [vmem:[%s1482 + $0x8] sm:$0xff] %v1485
                  %v1487 = vld [vmem:[%s1481 + $0x10] sm:$0xff]
                  %1488 = vst [vmem:[%s1482 + $0x10] sm:$0xff] %v1487
                  %v1489 = vld [vmem:[%s1481 + $0x18] sm:$0xff]
                  %1490 = vst [vmem:[%s1482 + $0x18] sm:$0xff] %v1489
                  %v1491 = vld [vmem:[%s1481 + $0x20] sm:$0xff]
                  %1492 = vst [vmem:[%s1482 + $0x20] sm:$0xff] %v1491
                  %v1493 = vld [vmem:[%s1481 + $0x28] sm:$0xff]
                  %1494 = vst [vmem:[%s1482 + $0x28] sm:$0xff] %v1493
                  %v1495 = vld [vmem:[%s1481 + $0x30] sm:$0xff]
                  %1496 = vst [vmem:[%s1482 + $0x30] sm:$0xff] %v1495
                  %v1497 = vld [vmem:[%s1481 + $0x38] sm:$0xff]
                  %1498 = vst [vmem:[%s1482 + $0x38] sm:$0xff] %v1497
                  %v1499 = vld [vmem:[%s1481 + $0x40] sm:$0xff]
                  %1500 = vst [vmem:[%s1482 + $0x40] sm:$0xff] %v1499
                  %v1501 = vld [vmem:[%s1481 + $0x48] sm:$0xff]
                  %1502 = vst [vmem:[%s1482 + $0x48] sm:$0xff] %v1501
                  %v1503 = vld [vmem:[%s1481 + $0x50] sm:$0xff]
                  %1504 = vst [vmem:[%s1482 + $0x50] sm:$0xff] %v1503
                  %v1505 = vld [vmem:[%s1481 + $0x58] sm:$0xff]
                  %1506 = vst [vmem:[%s1482 + $0x58] sm:$0xff] %v1505
                  %v1507 = vld [vmem:[%s1481 + $0x60] sm:$0xff]
                  %1508 = vst [vmem:[%s1482 + $0x60] sm:$0xff] %v1507
                  %v1509 = vld [vmem:[%s1481 + $0x68] sm:$0xff]
                  %1510 = vst [vmem:[%s1482 + $0x68] sm:$0xff] %v1509
                  %v1511 = vld [vmem:[%s1481 + $0x70] sm:$0xff]
                  %1512 = vst [vmem:[%s1482 + $0x70] sm:$0xff] %v1511
                  %v1513 = vld [vmem:[%s1481 + $0x78] sm:$0xff]
                  %1514 = vst [vmem:[%s1482 + $0x78] sm:$0xff] %v1513
                  %s1515 = sadd.s32 1, %s1480
                  %p1516 = scmp.ge.s32.totalorder %s1515, %s1473
                  %s1517 = scalar_select %p1516, 0, %s1515
                  %s1518 = smul.u32 %s1517, 128
                  %s1519 = smul.u32 %s1517, 128
                  %s1520 = scalar_lea.vmem %s1376, %s1518 [#allocation3]
                  %s1521 = scalar_lea.vmem %s1387, %s1519
                $region95: #{mlp_forward.1} parent=89 // loop_footer
                  %s1477 = sadd.s32 %s1475, 1
                $region96: #{mlp_forward.1} parent=89 // loop_footer_branch
                  %1474 = sbr.rel target = $region92
                $region97: #{mlp_forward.1} parent=89 // loop_exit
                  _
                %s1522 = sshrl.u32 %s1383, 4
                %s1523 = sand.u32 %s1383, 15
                %s1524 = smul.u32 %s1522, 16
                %s1525 = smul.u32 8, %s1524
                %s1526 = scalar_lea.vmem %s1376, %s1525 [#allocation3]
                %s1527 = smul.u32 8, %s1524
                %s1528 = scalar_lea.vmem %s1387, %s1527
                // While loop
                $region98: #{mlp_forward.1} parent=89 // loop_pre_header
                  _
                $region99: #{mlp_forward.1} parent=89 // loop_header
                  %s1530 = sphi 0, %s1532
                  %p1531 = scmp.ge.s32.totalorder %s1530, %s1523
                  %s1535 = sphi 0, %s1542
                  %s1536 = sphi %s1526, %s1545
                  %s1537 = sphi %s1528, %s1546
                $region100: #{mlp_forward.1} parent=89 // loop_header_branch
                  %1534 = sbr.rel (%p1531) target = $region104
                $region101: #{mlp_forward.1} parent=89 // loop_body
                  %v1538 = vld [vmem:[%s1536] sm:$0xff]
                  %1539 = vst [vmem:[%s1537] sm:$0xff] %v1538
                  %s1540 = sadd.s32 1, %s1535
                  %p1541 = scmp.ge.s32.totalorder %s1540, %s1523
                  %s1542 = scalar_select %p1541, 0, %s1540
                  %s1543 = smul.u32 %s1542, 8
                  %s1544 = smul.u32 %s1542, 8
                  %s1545 = scalar_lea.vmem %s1526, %s1543 [#allocation3]
                  %s1546 = scalar_lea.vmem %s1528, %s1544
                $region102: #{mlp_forward.1} parent=89 // loop_footer
                  %s1532 = sadd.s32 %s1530, 1
                $region103: #{mlp_forward.1} parent=89 // loop_footer_branch
                  %1529 = sbr.rel target = $region99
                $region104: #{mlp_forward.1} parent=89 // loop_exit
                  _
              $region90: #{mlp_forward.1} parent=67 // pred_fallthru
                _
              // Predicated region
              $region105: #{mlp_forward.1} parent=67 // pred_check
                _
              $region106: #{mlp_forward.1} parent=67 // pred_check_branch
                %1548 = sbr.rel target = $region108
              $region107: #{mlp_forward.1} parent=67 // pred_region
                _
              $region108: #{mlp_forward.1} parent=67 // pred_fallthru
                _
            $region68: #{mlp_forward.1} parent=63 // pred_fallthru
              _
            // Predicated region
            $region69: #{mlp_forward.1} parent=63 // pred_check
              _
            $region70: #{mlp_forward.1} parent=63 // pred_check_branch
              %1394 = sbr.rel target = $region72
            $region71: #{mlp_forward.1} parent=63 // pred_region
              %s1396 = ssub.s32 256, 1
              %s1397 = sshrl.u32 %s1383, 4
              // While loop
              $region73: #{mlp_forward.1} parent=71 // loop_pre_header
                _
              $region74: #{mlp_forward.1} parent=71 // loop_header
                %s1399 = sphi 0, %s1401
                %p1400 = scmp.ge.s32.totalorder %s1399, %s1397
                %s1404 = sphi 0, %s1441
                %s1405 = sphi %s1376, %s1444
                %s1406 = sphi %s1387, %s1445
              $region75: #{mlp_forward.1} parent=71 // loop_header_branch
                %1403 = sbr.rel (%p1400) target = $region79
              $region76: #{mlp_forward.1} parent=71 // loop_body
                %v1407 = vld [vmem:[%s1405] sm:%s1396]
                %1408 = vst [vmem:[%s1406] sm:%s1396] %v1407
                %v1409 = vld [vmem:[%s1405 + $0x8] sm:%s1396]
                %1410 = vst [vmem:[%s1406 + $0x8] sm:%s1396] %v1409
                %v1411 = vld [vmem:[%s1405 + $0x10] sm:%s1396]
                %1412 = vst [vmem:[%s1406 + $0x10] sm:%s1396] %v1411
                %v1413 = vld [vmem:[%s1405 + $0x18] sm:%s1396]
                %1414 = vst [vmem:[%s1406 + $0x18] sm:%s1396] %v1413
                %v1415 = vld [vmem:[%s1405 + $0x20] sm:%s1396]
                %1416 = vst [vmem:[%s1406 + $0x20] sm:%s1396] %v1415
                %v1417 = vld [vmem:[%s1405 + $0x28] sm:%s1396]
                %1418 = vst [vmem:[%s1406 + $0x28] sm:%s1396] %v1417
                %v1419 = vld [vmem:[%s1405 + $0x30] sm:%s1396]
                %1420 = vst [vmem:[%s1406 + $0x30] sm:%s1396] %v1419
                %v1421 = vld [vmem:[%s1405 + $0x38] sm:%s1396]
                %1422 = vst [vmem:[%s1406 + $0x38] sm:%s1396] %v1421
                %v1423 = vld [vmem:[%s1405 + $0x40] sm:%s1396]
                %1424 = vst [vmem:[%s1406 + $0x40] sm:%s1396] %v1423
                %v1425 = vld [vmem:[%s1405 + $0x48] sm:%s1396]
                %1426 = vst [vmem:[%s1406 + $0x48] sm:%s1396] %v1425
                %v1427 = vld [vmem:[%s1405 + $0x50] sm:%s1396]
                %1428 = vst [vmem:[%s1406 + $0x50] sm:%s1396] %v1427
                %v1429 = vld [vmem:[%s1405 + $0x58] sm:%s1396]
                %1430 = vst [vmem:[%s1406 + $0x58] sm:%s1396] %v1429
                %v1431 = vld [vmem:[%s1405 + $0x60] sm:%s1396]
                %1432 = vst [vmem:[%s1406 + $0x60] sm:%s1396] %v1431
                %v1433 = vld [vmem:[%s1405 + $0x68] sm:%s1396]
                %1434 = vst [vmem:[%s1406 + $0x68] sm:%s1396] %v1433
                %v1435 = vld [vmem:[%s1405 + $0x70] sm:%s1396]
                %1436 = vst [vmem:[%s1406 + $0x70] sm:%s1396] %v1435
                %v1437 = vld [vmem:[%s1405 + $0x78] sm:%s1396]
                %1438 = vst [vmem:[%s1406 + $0x78] sm:%s1396] %v1437
                %s1439 = sadd.s32 1, %s1404
                %p1440 = scmp.ge.s32.totalorder %s1439, %s1397
                %s1441 = scalar_select %p1440, 0, %s1439
                %s1442 = smul.u32 %s1441, 128
                %s1443 = smul.u32 %s1441, 128
                %s1444 = scalar_lea.vmem %s1376, %s1442 [#allocation3]
                %s1445 = scalar_lea.vmem %s1387, %s1443
              $region77: #{mlp_forward.1} parent=71 // loop_footer
                %s1401 = sadd.s32 %s1399, 1
              $region78: #{mlp_forward.1} parent=71 // loop_footer_branch
                %1398 = sbr.rel target = $region74
              $region79: #{mlp_forward.1} parent=71 // loop_exit
                _
              %s1446 = sshrl.u32 %s1383, 4
              %s1447 = sand.u32 %s1383, 15
              %s1448 = smul.u32 %s1446, 16
              %s1449 = smul.u32 8, %s1448
              %s1450 = scalar_lea.vmem %s1376, %s1449 [#allocation3]
              %s1451 = smul.u32 8, %s1448
              %s1452 = scalar_lea.vmem %s1387, %s1451
              // While loop
              $region80: #{mlp_forward.1} parent=71 // loop_pre_header
                _
              $region81: #{mlp_forward.1} parent=71 // loop_header
                %s1454 = sphi 0, %s1456
                %p1455 = scmp.ge.s32.totalorder %s1454, %s1447
                %s1459 = sphi 0, %s1466
                %s1460 = sphi %s1450, %s1469
                %s1461 = sphi %s1452, %s1470
              $region82: #{mlp_forward.1} parent=71 // loop_header_branch
                %1458 = sbr.rel (%p1455) target = $region86
              $region83: #{mlp_forward.1} parent=71 // loop_body
                %v1462 = vld [vmem:[%s1460] sm:%s1396]
                %1463 = vst [vmem:[%s1461] sm:%s1396] %v1462
                %s1464 = sadd.s32 1, %s1459
                %p1465 = scmp.ge.s32.totalorder %s1464, %s1447
                %s1466 = scalar_select %p1465, 0, %s1464
                %s1467 = smul.u32 %s1466, 8
                %s1468 = smul.u32 %s1466, 8
                %s1469 = scalar_lea.vmem %s1450, %s1467 [#allocation3]
                %s1470 = scalar_lea.vmem %s1452, %s1468
              $region84: #{mlp_forward.1} parent=71 // loop_footer
                %s1456 = sadd.s32 %s1454, 1
              $region85: #{mlp_forward.1} parent=71 // loop_footer_branch
                %1453 = sbr.rel target = $region81
              $region86: #{mlp_forward.1} parent=71 // loop_exit
                _
            $region72: #{mlp_forward.1} parent=63 // pred_fallthru
              _
          $region64: #{mlp_forward.1} parent=59 // pred_fallthru
            _
          %1549 = vnop
        $region60: #{mlp_forward.1} parent=55 // pred_fallthru
          _
      $region56: #{mlp_forward.1} parent=5 // pred_fallthru
        _
      %p1550 = scmp.le.s32.totalorder 2, %s17
      // Predicated region
      $region109: #{mlp_forward.1} parent=5 // pred_check
        %p1551 = pneg %p1550
      $region110: #{mlp_forward.1} parent=5 // pred_check_branch
        %1553 = sbr.rel (%p1551) target = $region112
      $region111: #{mlp_forward.1} parent=5 // pred_region
        %s1554 = ssub.s32 %s17, 2
        // Predicated region
        $region113: #{mlp_forward.1} parent=111 // pred_check
          %p1555 = pneg %p240
        $region114: #{mlp_forward.1} parent=111 // pred_check_branch
          %1557 = sbr.rel (%p1555) target = $region116
        $region115: #{mlp_forward.1} parent=111 // pred_region
          %s1558 = sand.u32 %s225, 1
          %s1559 = sand.u32 %s225, 1
          %s1560 = smul.addr %s1559, 128
          %s1561 = scalar_lea.vmem [#allocation3], %s1560
        $region116: #{mlp_forward.1} parent=111 // pred_fallthru
          _
      $region112: #{mlp_forward.1} parent=5 // pred_fallthru
        _
    $region6: #{mlp_forward.1} parent=1 // loop_footer
      %s21 = sadd.s32 1, %s17
    $region7: #{mlp_forward.1} parent=1 // loop_footer_branch
      %16 = sbr.rel target = $region3
    $region8: #{mlp_forward.1} parent=1 // loop_exit
      _

</llo_original>
